<compile_context>
chip_gen: v5e
topology: v5e:2x2
jax: 0.10.0
libtpu: 0.0.40
codegen_flags: <defaults>
</compile_context>

<pallas_src>
import functools

import jax
import jax.numpy as jnp
from jax.experimental import pallas as pl
from jax.experimental.pallas import tpu as pltpu


HIDDEN = 512
OUT_PAD = 128    # real fc4 output dim is 2; padded to 128 lanes for dense stores
NIN_PAD = 128    # input feature dim padded up to one full lane group


def _round_up(x, m):
    return ((x + m - 1) // m) * m


# ----------------------------------------------------------------------------
# Kernel: one batch tile, full MLP in VMEM (weights resident across grid).
# ----------------------------------------------------------------------------
def _mlp_kernel(x_ref, w1_ref, w2_ref, w3_ref, w4_ref, b_ref, out_ref):
    x = x_ref[...]                      # (TM, NIN_PAD) bf16
    b = b_ref[...]                      # (4, HIDDEN)   f32

    # fc1 + ReLU
    h1 = jnp.dot(x, w1_ref[...], preferred_element_type=jnp.float32) + b[0:1, :]
    h1 = jnp.maximum(h1, 0.0).astype(jnp.bfloat16)

    # fc2 + ReLU
    h2 = jnp.dot(h1, w2_ref[...], preferred_element_type=jnp.float32) + b[1:2, :]
    h2 = jnp.maximum(h2, 0.0).astype(jnp.bfloat16)

    # fc3 + ReLU
    h3 = jnp.dot(h2, w3_ref[...], preferred_element_type=jnp.float32) + b[2:3, :]
    h3 = jnp.maximum(h3, 0.0).astype(jnp.bfloat16)

    # fc4 (plain logits: useBCE=False, useNLL=False)
    logits = (jnp.dot(h3, w4_ref[...], preferred_element_type=jnp.float32)
              + b[3:4, :OUT_PAD])

    out_ref[...] = logits.astype(out_ref.dtype)


# ----------------------------------------------------------------------------
# One-time parameter preparation (padding / bf16 cast / bias stacking).
# ----------------------------------------------------------------------------
def prepare_params(params):
    (w1, b1), (w2, b2), (w3, b3), (w4, b4) = params
    n_in = w1.shape[0]
    n_out = w4.shape[1]
    nin_pad = _round_up(max(n_in, 1), NIN_PAD)

    w1p = (jnp.zeros((nin_pad, HIDDEN), jnp.float32)
           .at[:n_in, :].set(w1).astype(jnp.bfloat16))
    w2b = w2.astype(jnp.bfloat16)
    w3b = w3.astype(jnp.bfloat16)
    w4p = (jnp.zeros((HIDDEN, OUT_PAD), jnp.float32)
           .at[:, :n_out].set(w4).astype(jnp.bfloat16))

    # Fold all four biases into one resident (4, HIDDEN) f32 buffer.
    biases = (jnp.zeros((4, HIDDEN), jnp.float32)
              .at[0, :].set(b1)
              .at[1, :].set(b2)
              .at[2, :].set(b3)
              .at[3, :n_out].set(b4))

    return {"w1": w1p, "w2": w2b, "w3": w3b, "w4": w4p, "b": biases,
            "n_in": n_in, "n_out": n_out, "nin_pad": nin_pad}


# ----------------------------------------------------------------------------
# Forward pass wrapper.
# ----------------------------------------------------------------------------
@functools.partial(jax.jit, static_argnames=("tm",))
def _dn_network_forward_impl(xp, w1, w2, w3, w4, b, *, tm):
    BP, nin_pad = xp.shape
    grid = (BP // tm,)

    def const(shape):
        return pl.BlockSpec(shape, lambda i, _s=shape: tuple(0 for _ in _s))

    out = pl.pallas_call(
        _mlp_kernel,
        out_shape=jax.ShapeDtypeStruct((BP, OUT_PAD), jnp.float32),
        grid=grid,
        in_specs=[
            pl.BlockSpec((tm, nin_pad), lambda i: (i, 0)),   # x tile
            const(w1.shape),                                 # resident weights
            const(w2.shape),
            const(w3.shape),
            const(w4.shape),
            const(b.shape),                                  # stacked biases
        ],
        out_specs=pl.BlockSpec((tm, OUT_PAD), lambda i: (i, 0)),
        compiler_params=pltpu.CompilerParams(
            dimension_semantics=("parallel",)),
    )(xp, w1, w2, w3, w4, b)
    return out


def dn_network_forward(x, prep, *, tm=512):
    """Forward pass of DNNetwork. x: (B, Ninputs) float32. Returns (B, 2) logits."""
    B = x.shape[0]
    n_in = prep["n_in"]
    n_out = prep["n_out"]
    nin_pad = prep["nin_pad"]

    # Batch tile: at most `tm` rows, at least a full sublane group.
    TM = min(tm, _round_up(B, 8))
    BP = _round_up(B, TM)

    # Pad batch + feature dims, cast input to bf16 (f32 accumulation in-kernel).
    xp = jnp.zeros((BP, nin_pad), jnp.bfloat16).at[:B, :n_in].set(
        x.astype(jnp.bfloat16))

    out_padded = _dn_network_forward_impl(
        xp, prep["w1"], prep["w2"], prep["w3"], prep["w4"], prep["b"], tm=TM)
    return out_padded[:B, :n_out]


# ----------------------------------------------------------------------------
# Init + pure-JAX reference (f32) for verification.
# ----------------------------------------------------------------------------
def init_params(key, n_inputs):
    """Deterministic init matching PyTorch nn.Linear shapes (stored as (in, out))."""
    dims = [(n_inputs, HIDDEN), (HIDDEN, HIDDEN), (HIDDEN, HIDDEN), (HIDDEN, 2)]
    params = []
    for (fan_in, fan_out) in dims:
        key, kw, kb = jax.random.split(key, 3)
        bound = 1.0 / jnp.sqrt(fan_in)
        w = jax.random.uniform(kw, (fan_in, fan_out), jnp.float32, -bound, bound)
        b = jax.random.uniform(kb, (fan_out,), jnp.float32, -bound, bound)
        params.append((w, b))
    return params


def dn_network_ref(x, params):
    (w1, b1), (w2, b2), (w3, b3), (w4, b4) = params
    h = jnp.maximum(x @ w1 + b1, 0.0)
    h = jnp.maximum(h @ w2 + b2, 0.0)
    h = jnp.maximum(h @ w3 + b3, 0.0)
    return h @ w4 + b4


if __name__ == "__main__":
    key = jax.random.PRNGKey(0)
    n_inputs = 32

    kx, kp, kx2 = jax.random.split(key, 3)
    params = init_params(kp, n_inputs)
    prep = prepare_params(params)

    # Small batch (single grid step).
    batch = 8
    x = jax.random.normal(kx, (batch, n_inputs), jnp.float32)
    logits = jax.block_until_ready(dn_network_forward(x, prep))
    ref = dn_network_ref(x, params)
    assert logits.shape == (batch, 2), logits.shape
    assert jnp.allclose(logits, ref, atol=5e-2, rtol=5e-2), \
        "mismatch vs reference (small batch)"

    # Larger, non-multiple batch to exercise the batch grid + padding path.
    batch2 = 300
    x2 = jax.random.normal(kx2, (batch2, n_inputs), jnp.float32)
    logits2 = jax.block_until_ready(dn_network_forward(x2, prep))
    ref2 = dn_network_ref(x2, params)
    assert logits2.shape == (batch2, 2), logits2.shape
    assert jnp.allclose(logits2, ref2, atol=5e-2, rtol=5e-2), \
        "mismatch vs reference (large batch)"

    print("KERNEL_OK")
</pallas_src>

<mosaic_0001>
module attributes {stable_mosaic.version = 11 : i64} {
  func.func @_mlp_kernel(%arg0: i32, %arg1: memref<8x128xbf16, #tpu.memory_space<vmem>>, %arg2: memref<128x512xbf16, #tpu.memory_space<vmem>>, %arg3: memref<512x512xbf16, #tpu.memory_space<vmem>>, %arg4: memref<512x512xbf16, #tpu.memory_space<vmem>>, %arg5: memref<512x128xbf16, #tpu.memory_space<vmem>>, %arg6: memref<4x512xf32, #tpu.memory_space<vmem>>, %arg7: memref<8x128xf32, #tpu.memory_space<vmem>>) attributes {dimension_semantics = [#tpu.dimension_semantics<parallel>], iteration_bounds = array<i64: 1>, scalar_prefetch = 0 : i64, scratch_operands = 0 : i64, tpu.core_type = #tpu.core_type<tc>, window_params = [{transform_indices = @transform_0, window_bounds = array<i64: 8, 128>}, {pipeline_mode = #tpu.pipeline_mode<synchronous>, transform_indices = @transform_1, window_bounds = array<i64: 128, 512>}, {pipeline_mode = #tpu.pipeline_mode<synchronous>, transform_indices = @transform_2, window_bounds = array<i64: 512, 512>}, {pipeline_mode = #tpu.pipeline_mode<synchronous>, transform_indices = @transform_3, window_bounds = array<i64: 512, 512>}, {pipeline_mode = #tpu.pipeline_mode<synchronous>, transform_indices = @transform_4, window_bounds = array<i64: 512, 128>}, {pipeline_mode = #tpu.pipeline_mode<synchronous>, transform_indices = @transform_5, window_bounds = array<i64: 4, 512>}, {transform_indices = @transform_6, window_bounds = array<i64: 8, 128>}]} {
    %c0 = arith.constant 0 : index
    %c0_0 = arith.constant 0 : index
    %0 = vector.load %arg1[%c0, %c0_0] : memref<8x128xbf16, #tpu.memory_space<vmem>>, vector<8x128xbf16>
    %c0_1 = arith.constant 0 : index
    %c0_2 = arith.constant 0 : index
    %1 = vector.load %arg6[%c0_1, %c0_2] : memref<4x512xf32, #tpu.memory_space<vmem>>, vector<4x512xf32>
    %c0_3 = arith.constant 0 : index
    %c0_4 = arith.constant 0 : index
    %2 = vector.load %arg2[%c0_3, %c0_4] : memref<128x512xbf16, #tpu.memory_space<vmem>>, vector<128x512xbf16>
    %cst = arith.constant dense<0.000000e+00> : vector<8x512xf32>
    %3 = tpu.matmul %0, %2, %cst {dimension_numbers = #tpu.dot_dimension_numbers<[1], [0], [0], [1], [0, 0, 1, 1], [], []>} : vector<8x128xbf16>, vector<128x512xbf16>, vector<8x512xf32> -> vector<8x512xf32>
    %4 = vector.extract_strided_slice %1 {offsets = [0, 0], sizes = [1, 512], strides = [1, 1]} : vector<4x512xf32> to vector<1x512xf32>
    %5 = vector.broadcast %4 : vector<1x512xf32> to vector<8x512xf32>
    %6 = arith.addf %3, %5 : vector<8x512xf32>
    %cst_5 = arith.constant 0.000000e+00 : f32
    %7 = vector.broadcast %cst_5 : f32 to vector<8x512xf32>
    %8 = arith.maximumf %6, %7 : vector<8x512xf32>
    %9 = arith.truncf %8 : vector<8x512xf32> to vector<8x512xbf16>
    %c0_6 = arith.constant 0 : index
    %c0_7 = arith.constant 0 : index
    %10 = vector.load %arg3[%c0_6, %c0_7] : memref<512x512xbf16, #tpu.memory_space<vmem>>, vector<512x512xbf16>
    %cst_8 = arith.constant dense<0.000000e+00> : vector<8x512xf32>
    %11 = tpu.matmul %9, %10, %cst_8 {dimension_numbers = #tpu.dot_dimension_numbers<[1], [0], [0], [1], [0, 0, 1, 1], [], []>} : vector<8x512xbf16>, vector<512x512xbf16>, vector<8x512xf32> -> vector<8x512xf32>
    %12 = vector.extract_strided_slice %1 {offsets = [1, 0], sizes = [1, 512], strides = [1, 1]} : vector<4x512xf32> to vector<1x512xf32>
    %13 = vector.broadcast %12 : vector<1x512xf32> to vector<8x512xf32>
    %14 = arith.addf %11, %13 : vector<8x512xf32>
    %cst_9 = arith.constant 0.000000e+00 : f32
    %15 = vector.broadcast %cst_9 : f32 to vector<8x512xf32>
    %16 = arith.maximumf %14, %15 : vector<8x512xf32>
    %17 = arith.truncf %16 : vector<8x512xf32> to vector<8x512xbf16>
    %c0_10 = arith.constant 0 : index
    %c0_11 = arith.constant 0 : index
    %18 = vector.load %arg4[%c0_10, %c0_11] : memref<512x512xbf16, #tpu.memory_space<vmem>>, vector<512x512xbf16>
    %cst_12 = arith.constant dense<0.000000e+00> : vector<8x512xf32>
    %19 = tpu.matmul %17, %18, %cst_12 {dimension_numbers = #tpu.dot_dimension_numbers<[1], [0], [0], [1], [0, 0, 1, 1], [], []>} : vector<8x512xbf16>, vector<512x512xbf16>, vector<8x512xf32> -> vector<8x512xf32>
    %20 = vector.extract_strided_slice %1 {offsets = [2, 0], sizes = [1, 512], strides = [1, 1]} : vector<4x512xf32> to vector<1x512xf32>
    %21 = vector.broadcast %20 : vector<1x512xf32> to vector<8x512xf32>
    %22 = arith.addf %19, %21 : vector<8x512xf32>
    %cst_13 = arith.constant 0.000000e+00 : f32
    %23 = vector.broadcast %cst_13 : f32 to vector<8x512xf32>
    %24 = arith.maximumf %22, %23 : vector<8x512xf32>
    %25 = arith.truncf %24 : vector<8x512xf32> to vector<8x512xbf16>
    %c0_14 = arith.constant 0 : index
    %c0_15 = arith.constant 0 : index
    %26 = vector.load %arg5[%c0_14, %c0_15] : memref<512x128xbf16, #tpu.memory_space<vmem>>, vector<512x128xbf16>
    %cst_16 = arith.constant dense<0.000000e+00> : vector<8x128xf32>
    %27 = tpu.matmul %25, %26, %cst_16 {dimension_numbers = #tpu.dot_dimension_numbers<[1], [0], [0], [1], [0, 0, 1, 1], [], []>} : vector<8x512xbf16>, vector<512x128xbf16>, vector<8x128xf32> -> vector<8x128xf32>
    %28 = vector.extract_strided_slice %1 {offsets = [3, 0], sizes = [1, 128], strides = [1, 1]} : vector<4x512xf32> to vector<1x128xf32>
    %29 = vector.broadcast %28 : vector<1x128xf32> to vector<8x128xf32>
    %30 = arith.addf %27, %29 : vector<8x128xf32>
    %c0_17 = arith.constant 0 : index
    %c0_18 = arith.constant 0 : index
    %31 = vector.load %arg7[%c0_17, %c0_18] : memref<8x128xf32, #tpu.memory_space<vmem>>, vector<8x128xf32>
    tpu.vector_store %arg7[%c0_17, %c0_18], %30 {strides = array<i32>} : memref<8x128xf32, #tpu.memory_space<vmem>>, vector<8x128xf32>,
    return
  }
  func.func @transform_0(%arg0: i32) -> (i32, i32) {
    %c0_i32 = arith.constant 0 : i32
    %c0_i32_0 = arith.constant 0 : i32
    return %arg0, %c0_i32 : i32, i32
  }
  func.func @transform_1(%arg0: i32) -> (i32, i32) {
    %c0_i32 = arith.constant 0 : i32
    %c0_i32_0 = arith.constant 0 : i32
    %c0_i32_1 = arith.constant 0 : i32
    return %c0_i32, %c0_i32_0 : i32, i32
  }
  func.func @transform_2(%arg0: i32) -> (i32, i32) {
    %c0_i32 = arith.constant 0 : i32
    %c0_i32_0 = arith.constant 0 : i32
    %c0_i32_1 = arith.constant 0 : i32
    return %c0_i32, %c0_i32_0 : i32, i32
  }
  func.func @transform_3(%arg0: i32) -> (i32, i32) {
    %c0_i32 = arith.constant 0 : i32
    %c0_i32_0 = arith.constant 0 : i32
    %c0_i32_1 = arith.constant 0 : i32
    return %c0_i32, %c0_i32_0 : i32, i32
  }
  func.func @transform_4(%arg0: i32) -> (i32, i32) {
    %c0_i32 = arith.constant 0 : i32
    %c0_i32_0 = arith.constant 0 : i32
    %c0_i32_1 = arith.constant 0 : i32
    return %c0_i32, %c0_i32_0 : i32, i32
  }
  func.func @transform_5(%arg0: i32) -> (i32, i32) {
    %c0_i32 = arith.constant 0 : i32
    %c0_i32_0 = arith.constant 0 : i32
    %c0_i32_1 = arith.constant 0 : i32
    return %c0_i32, %c0_i32_0 : i32, i32
  }
  func.func @transform_6(%arg0: i32) -> (i32, i32) {
    %c0_i32 = arith.constant 0 : i32
    %c0_i32_0 = arith.constant 0 : i32
    return %arg0, %c0_i32 : i32, i32
  }
}

</mosaic_0001>

<llo_original>
// kernel: _dn_network_forward_impl.1
$region0: #{_dn_network_forward_impl.1}
  #allocation0 [shape = 'u32[]', space=smem, size = 0x4, offset = 0x4, fixed_abs, tag = 'smem constant byte address 0x4 - core index']
  #allocation1 [shape = 'u32[72,128]{1,0:T(1,128)}', space=vmem, size = 0x9000, scoped, tag = 'internal scratch']
  %s0 = inlined_call_operand.hbm [shape: bf16[8,128], index: 0, kind: input, shape index: {}]
  %s1 = inlined_call_operand.hbm [shape: bf16[128,512], index: 1, kind: input, shape index: {}]
  %s2 = inlined_call_operand.hbm [shape: bf16[512,512], index: 2, kind: input, shape index: {}]
  %s3 = inlined_call_operand.hbm [shape: bf16[512,512], index: 3, kind: input, shape index: {}]
  %s4 = inlined_call_operand.hbm [shape: bf16[512,128], index: 4, kind: input, shape index: {}]
  %s5 = inlined_call_operand.hbm [shape: f32[4,512], index: 5, kind: input, shape index: {}]
  %s6 = inlined_call_operand.hbm [shape: f32[8,128], index: 6, kind: output, shape index: {}]
  %s7 = sld [smem:[#allocation0]]
  $region58: #{_dn_network_forward_impl.1} parent=0
    _
  %s9 = ssub.s32 1, %s7
  %s10 = scalar_select 0, %s9, %s7
  $region1: #{_dn_network_forward_impl.1} parent=0
    #allocation2 [shape = 'u8[2048]{0}', space=vmem, size = 0x800, scoped, tag = 'input window, operand 0, single buffered']
    #allocation3 [shape = 's32[1]{0}', space=sflag, size = 0x4, scoped, tag = 'scoped memory for _dn_network_forward_impl.1']
    #allocation4 [shape = 's32[1]{0}', space=sflag, size = 0x4, scoped, tag = 'scoped memory for _dn_network_forward_impl.1']
    #allocation5 [shape = 'u8[131072]{0}', space=vmem, size = 0x20000, scoped, tag = 'input window, operand 1, single buffered']
    #allocation6 [shape = 's32[1]{0}', space=sflag, size = 0x4, scoped, tag = 'scoped memory for _dn_network_forward_impl.1']
    #allocation7 [shape = 'u8[524288]{0}', space=vmem, size = 0x80000, scoped, tag = 'input window, operand 2, single buffered']
    #allocation8 [shape = 'u8[524288]{0}', space=vmem, size = 0x80000, scoped, tag = 'input window, operand 3, single buffered']
    #allocation9 [shape = 's32[1]{0}', space=sflag, size = 0x4, scoped, tag = 'scoped memory for _dn_network_forward_impl.1']
    #allocation10 [shape = 'u8[131072]{0}', space=vmem, size = 0x20000, scoped, tag = 'input window, operand 4, single buffered']
    #allocation11 [shape = 'u8[8192]{0}', space=vmem, size = 0x2000, scoped, tag = 'input window, operand 5, single buffered']
    #allocation12 [shape = 's32[1]{0}', space=sflag, size = 0x4, scoped, tag = 'scoped memory for _dn_network_forward_impl.1']
    #allocation13 [shape = 'u8[4096]{0}', space=vmem, size = 0x1000, scoped, tag = 'output window, operand 0, single buffered']
    %11 = vsyncpa [#allocation3], 0
    %12 = vsyncpa [#allocation6], 0
    %13 = vsyncpa [#allocation9], 0
    %14 = vsyncpa [#allocation12], 0
    %15 = vsyncpa [#allocation4], 0
    // Predicated region
    $region2: #{_dn_network_forward_impl.1} parent=1 // pred_check
      _
    $region3: #{_dn_network_forward_impl.1} parent=1 // pred_check_branch
      %17 = sbr.rel (0) target = $region5
    $region4: #{_dn_network_forward_impl.1} parent=1 // pred_region
      %19 = vsyncadd [#allocation3], 0
      %s21 = sshll.u32 %s0, 4
      %s22 = int_to_ptr.hbm [resolvable:$true] %s21
      %s23 = sshll.u32 [#allocation2], 4
      %s24 = int_to_ptr.vmem [resolvable:$true] %s23
      %26 = dma.hbm_to_vmem [thread:$0]  %s22, 64, %s24, [#allocation3]
    $region5: #{_dn_network_forward_impl.1} parent=1 // pred_fallthru
      _
    // Predicated region
    $region6: #{_dn_network_forward_impl.1} parent=1 // pred_check
      _
    $region7: #{_dn_network_forward_impl.1} parent=1 // pred_check_branch
      %28 = sbr.rel (0) target = $region9
    $region8: #{_dn_network_forward_impl.1} parent=1 // pred_region
      %30 = vsyncadd [#allocation6], 0
      %s31 = sshll.u32 %s1, 4
      %s32 = int_to_ptr.hbm [resolvable:$true] %s31
      %s33 = sshll.u32 [#allocation5], 4
      %s34 = int_to_ptr.vmem [resolvable:$true] %s33
      %39 = dma.hbm_to_vmem [thread:$0]  %s32, 4096, %s34, [#allocation6], 256, 256, 16
    $region9: #{_dn_network_forward_impl.1} parent=1 // pred_fallthru
      _
    // Predicated region
    $region10: #{_dn_network_forward_impl.1} parent=1 // pred_check
      _
    $region11: #{_dn_network_forward_impl.1} parent=1 // pred_check_branch
      %41 = sbr.rel (0) target = $region13
    $region12: #{_dn_network_forward_impl.1} parent=1 // pred_region
      %43 = vsyncadd [#allocation6], 0
      %s44 = sshll.u32 %s2, 4
      %s45 = int_to_ptr.hbm [resolvable:$true] %s44
      %s46 = sshll.u32 [#allocation7], 4
      %s47 = int_to_ptr.vmem [resolvable:$true] %s46
      %52 = dma.hbm_to_vmem [thread:$0]  %s45, 16384, %s47, [#allocation6], 256, 256, 16
    $region13: #{_dn_network_forward_impl.1} parent=1 // pred_fallthru
      _
    // Predicated region
    $region14: #{_dn_network_forward_impl.1} parent=1 // pred_check
      _
    $region15: #{_dn_network_forward_impl.1} parent=1 // pred_check_branch
      %54 = sbr.rel (0) target = $region17
    $region16: #{_dn_network_forward_impl.1} parent=1 // pred_region
      %56 = vsyncadd [#allocation9], 0
      %s57 = sshll.u32 %s3, 4
      %s58 = int_to_ptr.hbm [resolvable:$true] %s57
      %s59 = sshll.u32 [#allocation8], 4
      %s60 = int_to_ptr.vmem [resolvable:$true] %s59
      %65 = dma.hbm_to_vmem [thread:$0]  %s58, 16384, %s60, [#allocation9], 256, 256, 16
    $region17: #{_dn_network_forward_impl.1} parent=1 // pred_fallthru
      _
    // Predicated region
    $region18: #{_dn_network_forward_impl.1} parent=1 // pred_check
      _
    $region19: #{_dn_network_forward_impl.1} parent=1 // pred_check_branch
      %67 = sbr.rel (0) target = $region21
    $region20: #{_dn_network_forward_impl.1} parent=1 // pred_region
      %69 = vsyncadd [#allocation9], 0
      %s70 = sshll.u32 %s4, 4
      %s71 = int_to_ptr.hbm [resolvable:$true] %s70
      %s72 = sshll.u32 [#allocation10], 4
      %s73 = int_to_ptr.vmem [resolvable:$true] %s72
      %78 = dma.hbm_to_vmem [thread:$0]  %s71, 4096, %s73, [#allocation9], 64, 64, 4
    $region21: #{_dn_network_forward_impl.1} parent=1 // pred_fallthru
      _
    // Predicated region
    $region22: #{_dn_network_forward_impl.1} parent=1 // pred_check
      _
    $region23: #{_dn_network_forward_impl.1} parent=1 // pred_check_branch
      %80 = sbr.rel (0) target = $region25
    $region24: #{_dn_network_forward_impl.1} parent=1 // pred_region
      %82 = vsyncadd [#allocation12], 0
      %s84 = sshll.u32 %s5, 4
      %s85 = int_to_ptr.hbm [resolvable:$true] %s84
      %s86 = sshll.u32 [#allocation11], 4
      %s87 = int_to_ptr.vmem [resolvable:$true] %s86
      %89 = dma.hbm_to_vmem [thread:$0]  %s85, 256, %s87, [#allocation12]
    $region25: #{_dn_network_forward_impl.1} parent=1 // pred_fallthru
      _
    // Predicated region
    $region26: #{_dn_network_forward_impl.1} parent=1 // pred_check
      _
    $region27: #{_dn_network_forward_impl.1} parent=1 // pred_check_branch
      %91 = sbr.rel (0) target = $region29
    $region28: #{_dn_network_forward_impl.1} parent=1 // pred_region
      %93 = dma.done [#allocation3], 64
    $region29: #{_dn_network_forward_impl.1} parent=1 // pred_fallthru
      _
    // Predicated region
    $region30: #{_dn_network_forward_impl.1} parent=1 // pred_check
      _
    $region31: #{_dn_network_forward_impl.1} parent=1 // pred_check_branch
      %95 = sbr.rel (0) target = $region33
    $region32: #{_dn_network_forward_impl.1} parent=1 // pred_region
      %97 = dma.done [#allocation6], 4096
    $region33: #{_dn_network_forward_impl.1} parent=1 // pred_fallthru
      _
    // Predicated region
    $region34: #{_dn_network_forward_impl.1} parent=1 // pred_check
      _
    $region35: #{_dn_network_forward_impl.1} parent=1 // pred_check_branch
      %99 = sbr.rel (0) target = $region37
    $region36: #{_dn_network_forward_impl.1} parent=1 // pred_region
      %101 = dma.done [#allocation6], 16384
    $region37: #{_dn_network_forward_impl.1} parent=1 // pred_fallthru
      _
    // Predicated region
    $region38: #{_dn_network_forward_impl.1} parent=1 // pred_check
      _
    $region39: #{_dn_network_forward_impl.1} parent=1 // pred_check_branch
      %103 = sbr.rel (0) target = $region41
    $region40: #{_dn_network_forward_impl.1} parent=1 // pred_region
      %105 = dma.done [#allocation9], 16384
    $region41: #{_dn_network_forward_impl.1} parent=1 // pred_fallthru
      _
    // Predicated region
    $region42: #{_dn_network_forward_impl.1} parent=1 // pred_check
      _
    $region43: #{_dn_network_forward_impl.1} parent=1 // pred_check_branch
      %107 = sbr.rel (0) target = $region45
    $region44: #{_dn_network_forward_impl.1} parent=1 // pred_region
      %109 = dma.done [#allocation9], 4096
    $region45: #{_dn_network_forward_impl.1} parent=1 // pred_fallthru
      _
    // Predicated region
    $region46: #{_dn_network_forward_impl.1} parent=1 // pred_check
      _
    $region47: #{_dn_network_forward_impl.1} parent=1 // pred_check_branch
      %111 = sbr.rel (0) target = $region49
    $region48: #{_dn_network_forward_impl.1} parent=1 // pred_region
      %113 = dma.done [#allocation12], 256
    $region49: #{_dn_network_forward_impl.1} parent=1 // pred_fallthru
      _
    %v114 = vld [vmem:[#allocation2] sm:$0xf]
    %v115 = vld [vmem:[#allocation11] sm:$0xff]
    %v116 = vld [vmem:[#allocation11 + $0x8] sm:$0xff]
    %v117 = vld [vmem:[#allocation5] sm:$0xff]
    %v118 = vld [vmem:[#allocation5 + $0x8] sm:$0xff]
    %v119 = vld [vmem:[#allocation5 + $0x10] sm:$0xff]
    %v120 = vld [vmem:[#allocation5 + $0x18] sm:$0xff]
    %v121 = vld [vmem:[#allocation5 + $0x20] sm:$0xff]
    %v122 = vld [vmem:[#allocation5 + $0x28] sm:$0xff]
    %v123 = vld [vmem:[#allocation5 + $0x30] sm:$0xff]
    %v124 = vld [vmem:[#allocation5 + $0x38] sm:$0xff]
    %v125 = vld [vmem:[#allocation5 + $0x40] sm:$0xff]
    %v126 = vld [vmem:[#allocation5 + $0x48] sm:$0xff]
    %v127 = vld [vmem:[#allocation5 + $0x50] sm:$0xff]
    %v128 = vld [vmem:[#allocation5 + $0x58] sm:$0xff]
    %v129 = vld [vmem:[#allocation5 + $0x60] sm:$0xff]
    %v130 = vld [vmem:[#allocation5 + $0x68] sm:$0xff]
    %v131 = vld [vmem:[#allocation5 + $0x70] sm:$0xff]
    %v132 = vld [vmem:[#allocation5 + $0x78] sm:$0xff]
    %v133 = vld [vmem:[#allocation5 + $0x80] sm:$0xff]
    %v134 = vld [vmem:[#allocation5 + $0x88] sm:$0xff]
    %v135 = vld [vmem:[#allocation5 + $0x90] sm:$0xff]
    %v136 = vld [vmem:[#allocation5 + $0x98] sm:$0xff]
    %v137 = vld [vmem:[#allocation5 + $0xa0] sm:$0xff]
    %v138 = vld [vmem:[#allocation5 + $0xa8] sm:$0xff]
    %v139 = vld [vmem:[#allocation5 + $0xb0] sm:$0xff]
    %v140 = vld [vmem:[#allocation5 + $0xb8] sm:$0xff]
    %v141 = vld [vmem:[#allocation5 + $0xc0] sm:$0xff]
    %v142 = vld [vmem:[#allocation5 + $0xc8] sm:$0xff]
    %v143 = vld [vmem:[#allocation5 + $0xd0] sm:$0xff]
    %v144 = vld [vmem:[#allocation5 + $0xd8] sm:$0xff]
    %v145 = vld [vmem:[#allocation5 + $0xe0] sm:$0xff]
    %v146 = vld [vmem:[#allocation5 + $0xe8] sm:$0xff]
    %v147 = vld [vmem:[#allocation5 + $0xf0] sm:$0xff]
    %v148 = vld [vmem:[#allocation5 + $0xf8] sm:$0xff]
    %v151 = vperm.slane %v115, 0
    %v152 = vperm.slane %v115, 4
    %v153 = vperm.slane %v116, 0
    %v154 = vperm.slane %v116, 4
    %v159 = vperm.slane %v151, 0
    %v160 = vperm.slane %v152, 0
    %v161 = vperm.slane %v153, 0
    %v162 = vperm.slane %v154, 0
    %v195 = vunpack.c.l.b16 %v117
    %v196 = vunpack.c.h.b16 %v117
    %v197 = vunpack.c.l.b16 %v118
    %v198 = vunpack.c.h.b16 %v118
    %v199 = vunpack.c.l.b16 %v119
    %v200 = vunpack.c.h.b16 %v119
    %v201 = vunpack.c.l.b16 %v120
    %v202 = vunpack.c.h.b16 %v120
    %v203 = vunpack.c.l.b16 %v121
    %v204 = vunpack.c.h.b16 %v121
    %v205 = vunpack.c.l.b16 %v122
    %v206 = vunpack.c.h.b16 %v122
    %v207 = vunpack.c.l.b16 %v123
    %v208 = vunpack.c.h.b16 %v123
    %v209 = vunpack.c.l.b16 %v124
    %v210 = vunpack.c.h.b16 %v124
    %v211 = vunpack.c.l.b16 %v125
    %v212 = vunpack.c.h.b16 %v125
    %v213 = vunpack.c.l.b16 %v126
    %v214 = vunpack.c.h.b16 %v126
    %v215 = vunpack.c.l.b16 %v127
    %v216 = vunpack.c.h.b16 %v127
    %v217 = vunpack.c.l.b16 %v128
    %v218 = vunpack.c.h.b16 %v128
    %v219 = vunpack.c.l.b16 %v129
    %v220 = vunpack.c.h.b16 %v129
    %v221 = vunpack.c.l.b16 %v130
    %v222 = vunpack.c.h.b16 %v130
    %v223 = vunpack.c.l.b16 %v131
    %v224 = vunpack.c.h.b16 %v131
    %v225 = vunpack.c.l.b16 %v132
    %v226 = vunpack.c.h.b16 %v132
    %v227 = vunpack.c.l.b16 %v133
    %v228 = vunpack.c.h.b16 %v133
    %v229 = vunpack.c.l.b16 %v134
    %v230 = vunpack.c.h.b16 %v134
    %v231 = vunpack.c.l.b16 %v135
    %v232 = vunpack.c.h.b16 %v135
    %v233 = vunpack.c.l.b16 %v136
    %v234 = vunpack.c.h.b16 %v136
    %v235 = vunpack.c.l.b16 %v137
    %v236 = vunpack.c.h.b16 %v137
    %v237 = vunpack.c.l.b16 %v138
    %v238 = vunpack.c.h.b16 %v138
    %v239 = vunpack.c.l.b16 %v139
    %v240 = vunpack.c.h.b16 %v139
    %v241 = vunpack.c.l.b16 %v140
    %v242 = vunpack.c.h.b16 %v140
    %v243 = vunpack.c.l.b16 %v141
    %v244 = vunpack.c.h.b16 %v141
    %v245 = vunpack.c.l.b16 %v142
    %v246 = vunpack.c.h.b16 %v142
    %v247 = vunpack.c.l.b16 %v143
    %v248 = vunpack.c.h.b16 %v143
    %v249 = vunpack.c.l.b16 %v144
    %v250 = vunpack.c.h.b16 %v144
    %v251 = vunpack.c.l.b16 %v145
    %v252 = vunpack.c.h.b16 %v145
    %v253 = vunpack.c.l.b16 %v146
    %v254 = vunpack.c.h.b16 %v146
    %v255 = vunpack.c.l.b16 %v147
    %v256 = vunpack.c.h.b16 %v147
    %v257 = vunpack.c.l.b16 %v148
    %v258 = vunpack.c.h.b16 %v148
    %v259 = vpack.c.b16 %v199, %v195
    %v260 = vpack.c.b16 %v200, %v196
    %v261 = vpack.c.b16 %v201, %v197
    %v262 = vpack.c.b16 %v202, %v198
    %v263 = vpack.c.b16 %v207, %v203
    %v264 = vpack.c.b16 %v208, %v204
    %v265 = vpack.c.b16 %v209, %v205
    %v266 = vpack.c.b16 %v210, %v206
    %v267 = vpack.c.b16 %v215, %v211
    %v268 = vpack.c.b16 %v216, %v212
    %v269 = vpack.c.b16 %v217, %v213
    %v270 = vpack.c.b16 %v218, %v214
    %v271 = vpack.c.b16 %v223, %v219
    %v272 = vpack.c.b16 %v224, %v220
    %v273 = vpack.c.b16 %v225, %v221
    %v274 = vpack.c.b16 %v226, %v222
    %v275 = vpack.c.b16 %v231, %v227
    %v276 = vpack.c.b16 %v232, %v228
    %v277 = vpack.c.b16 %v233, %v229
    %v278 = vpack.c.b16 %v234, %v230
    %v279 = vpack.c.b16 %v239, %v235
    %v280 = vpack.c.b16 %v240, %v236
    %v281 = vpack.c.b16 %v241, %v237
    %v282 = vpack.c.b16 %v242, %v238
    %v283 = vpack.c.b16 %v247, %v243
    %v284 = vpack.c.b16 %v248, %v244
    %v285 = vpack.c.b16 %v249, %v245
    %v286 = vpack.c.b16 %v250, %v246
    %v287 = vpack.c.b16 %v255, %v251
    %v288 = vpack.c.b16 %v256, %v252
    %v289 = vpack.c.b16 %v257, %v253
    %v290 = vpack.c.b16 %v258, %v254
    %323 = vmatpush.bf16.msra.mxu0 %v287
    %324 = vmatpush.bf16.msra.mxu0 %v283
    %325 = vmatpush.bf16.msra.mxu0 %v279
    %326 = vmatpush.bf16.msra.mxu0 %v275
    %327 = vmatpush.bf16.msra.mxu0 %v271
    %328 = vmatpush.bf16.msra.mxu0 %v267
    %329 = vmatpush.bf16.msra.mxu0 %v263
    %330 = vmatpush.bf16.msra.mxu0 %v259
    %331 = vmatmul.bf16.gmra.mxu0 %v114
    %v332 = vpop.f32.mrf.mxu0
    %v333 = vadd.f32 %v159, %v332
    %v334 = vpop.f32.mrf.mxu0
    %335 = vdwg.mxu0
    %336 = vmatpush.bf16.msra.mxu0 %v288
    %337 = vmatpush.bf16.msra.mxu0 %v284
    %338 = vmatpush.bf16.msra.mxu0 %v280
    %339 = vmatpush.bf16.msra.mxu0 %v276
    %340 = vmatpush.bf16.msra.mxu0 %v272
    %341 = vmatpush.bf16.msra.mxu0 %v268
    %342 = vmatpush.bf16.msra.mxu0 %v264
    %343 = vmatpush.bf16.msra.mxu0 %v260
    %344 = vmatmul.bf16.gmra.mxu0 %v114
    %v345 = vpop.f32.mrf.mxu0
    %v346 = vadd.f32 %v160, %v345
    %v347 = vpop.f32.mrf.mxu0
    %348 = vdwg.mxu0
    %349 = vmatpush.bf16.msra.mxu0 %v289
    %350 = vmatpush.bf16.msra.mxu0 %v285
    %351 = vmatpush.bf16.msra.mxu0 %v281
    %352 = vmatpush.bf16.msra.mxu0 %v277
    %353 = vmatpush.bf16.msra.mxu0 %v273
    %354 = vmatpush.bf16.msra.mxu0 %v269
    %355 = vmatpush.bf16.msra.mxu0 %v265
    %356 = vmatpush.bf16.msra.mxu0 %v261
    %357 = vmatmul.bf16.gmra.mxu0 %v114
    %v358 = vpop.f32.mrf.mxu0
    %v359 = vadd.f32 %v161, %v358
    %v360 = vpop.f32.mrf.mxu0
    %361 = vdwg.mxu0
    %362 = vmatpush.bf16.msra.mxu0 %v290
    %363 = vmatpush.bf16.msra.mxu0 %v286
    %364 = vmatpush.bf16.msra.mxu0 %v282
    %365 = vmatpush.bf16.msra.mxu0 %v278
    %366 = vmatpush.bf16.msra.mxu0 %v274
    %367 = vmatpush.bf16.msra.mxu0 %v270
    %368 = vmatpush.bf16.msra.mxu0 %v266
    %369 = vmatpush.bf16.msra.mxu0 %v262
    %370 = vmatmul.bf16.gmra.mxu0 %v114
    %v371 = vpop.f32.mrf.mxu0
    %v372 = vadd.f32 %v162, %v371
    %v373 = vpop.f32.mrf.mxu0
    %374 = vdwg.mxu0
    %v375 = vmax.f32 %v333, 0.0
    %v376 = vmax.f32 %v346, 0.0
    %v377 = vmax.f32 %v359, 0.0
    %v378 = vmax.f32 %v372, 0.0
    %v379 = vpack.c.bf16 %v375, %v375
    %v380 = vpack.c.bf16 %v376, %v376
    %v381 = vpack.c.bf16 %v377, %v377
    %v382 = vpack.c.bf16 %v378, %v378
    %v383 = vld [vmem:[#allocation7] sm:$0xff]
    %v384 = vld [vmem:[#allocation7 + $0x8] sm:$0xff]
    %v385 = vld [vmem:[#allocation7 + $0x10] sm:$0xff]
    %v386 = vld [vmem:[#allocation7 + $0x18] sm:$0xff]
    %v387 = vld [vmem:[#allocation7 + $0x20] sm:$0xff]
    %v388 = vld [vmem:[#allocation7 + $0x28] sm:$0xff]
    %v389 = vld [vmem:[#allocation7 + $0x30] sm:$0xff]
    %v390 = vld [vmem:[#allocation7 + $0x38] sm:$0xff]
    %v391 = vld [vmem:[#allocation7 + $0x40] sm:$0xff]
    %v392 = vld [vmem:[#allocation7 + $0x48] sm:$0xff]
    %v393 = vld [vmem:[#allocation7 + $0x50] sm:$0xff]
    %v394 = vld [vmem:[#allocation7 + $0x58] sm:$0xff]
    %v395 = vld [vmem:[#allocation7 + $0x60] sm:$0xff]
    %v396 = vld [vmem:[#allocation7 + $0x68] sm:$0xff]
    %v397 = vld [vmem:[#allocation7 + $0x70] sm:$0xff]
    %v398 = vld [vmem:[#allocation7 + $0x78] sm:$0xff]
    %v399 = vld [vmem:[#allocation7 + $0x80] sm:$0xff]
    %v400 = vld [vmem:[#allocation7 + $0x88] sm:$0xff]
    %v401 = vld [vmem:[#allocation7 + $0x90] sm:$0xff]
    %v402 = vld [vmem:[#allocation7 + $0x98] sm:$0xff]
    %v403 = vld [vmem:[#allocation7 + $0xa0] sm:$0xff]
    %v404 = vld [vmem:[#allocation7 + $0xa8] sm:$0xff]
    %v405 = vld [vmem:[#allocation7 + $0xb0] sm:$0xff]
    %v406 = vld [vmem:[#allocation7 + $0xb8] sm:$0xff]
    %v407 = vld [vmem:[#allocation7 + $0xc0] sm:$0xff]
    %v408 = vld [vmem:[#allocation7 + $0xc8] sm:$0xff]
    %v409 = vld [vmem:[#allocation7 + $0xd0] sm:$0xff]
    %v410 = vld [vmem:[#allocation7 + $0xd8] sm:$0xff]
    %v411 = vld [vmem:[#allocation7 + $0xe0] sm:$0xff]
    %v412 = vld [vmem:[#allocation7 + $0xe8] sm:$0xff]
    %v413 = vld [vmem:[#allocation7 + $0xf0] sm:$0xff]
    %v414 = vld [vmem:[#allocation7 + $0xf8] sm:$0xff]
    %v415 = vld [vmem:[#allocation7 + $0x100] sm:$0xff]
    %v416 = vld [vmem:[#allocation7 + $0x108] sm:$0xff]
    %v417 = vld [vmem:[#allocation7 + $0x110] sm:$0xff]
    %v418 = vld [vmem:[#allocation7 + $0x118] sm:$0xff]
    %v419 = vld [vmem:[#allocation7 + $0x120] sm:$0xff]
    %v420 = vld [vmem:[#allocation7 + $0x128] sm:$0xff]
    %v421 = vld [vmem:[#allocation7 + $0x130] sm:$0xff]
    %v422 = vld [vmem:[#allocation7 + $0x138] sm:$0xff]
    %v423 = vld [vmem:[#allocation7 + $0x140] sm:$0xff]
    %v424 = vld [vmem:[#allocation7 + $0x148] sm:$0xff]
    %v425 = vld [vmem:[#allocation7 + $0x150] sm:$0xff]
    %v426 = vld [vmem:[#allocation7 + $0x158] sm:$0xff]
    %v427 = vld [vmem:[#allocation7 + $0x160] sm:$0xff]
    %v428 = vld [vmem:[#allocation7 + $0x168] sm:$0xff]
    %v429 = vld [vmem:[#allocation7 + $0x170] sm:$0xff]
    %v430 = vld [vmem:[#allocation7 + $0x178] sm:$0xff]
    %v431 = vld [vmem:[#allocation7 + $0x180] sm:$0xff]
    %v432 = vld [vmem:[#allocation7 + $0x188] sm:$0xff]
    %v433 = vld [vmem:[#allocation7 + $0x190] sm:$0xff]
    %v434 = vld [vmem:[#allocation7 + $0x198] sm:$0xff]
    %v435 = vld [vmem:[#allocation7 + $0x1a0] sm:$0xff]
    %v436 = vld [vmem:[#allocation7 + $0x1a8] sm:$0xff]
    %v437 = vld [vmem:[#allocation7 + $0x1b0] sm:$0xff]
    %v438 = vld [vmem:[#allocation7 + $0x1b8] sm:$0xff]
    %v439 = vld [vmem:[#allocation7 + $0x1c0] sm:$0xff]
    %v440 = vld [vmem:[#allocation7 + $0x1c8] sm:$0xff]
    %v441 = vld [vmem:[#allocation7 + $0x1d0] sm:$0xff]
    %v442 = vld [vmem:[#allocation7 + $0x1d8] sm:$0xff]
    %v443 = vld [vmem:[#allocation7 + $0x1e0] sm:$0xff]
    %v444 = vld [vmem:[#allocation7 + $0x1e8] sm:$0xff]
    %v445 = vld [vmem:[#allocation7 + $0x1f0] sm:$0xff]
    %v446 = vld [vmem:[#allocation7 + $0x1f8] sm:$0xff]
    %v447 = vld [vmem:[#allocation7 + $0x200] sm:$0xff]
    %v448 = vld [vmem:[#allocation7 + $0x208] sm:$0xff]
    %v449 = vld [vmem:[#allocation7 + $0x210] sm:$0xff]
    %v450 = vld [vmem:[#allocation7 + $0x218] sm:$0xff]
    %v451 = vld [vmem:[#allocation7 + $0x220] sm:$0xff]
    %v452 = vld [vmem:[#allocation7 + $0x228] sm:$0xff]
    %v453 = vld [vmem:[#allocation7 + $0x230] sm:$0xff]
    %v454 = vld [vmem:[#allocation7 + $0x238] sm:$0xff]
    %v455 = vld [vmem:[#allocation7 + $0x240] sm:$0xff]
    %v456 = vld [vmem:[#allocation7 + $0x248] sm:$0xff]
    %v457 = vld [vmem:[#allocation7 + $0x250] sm:$0xff]
    %v458 = vld [vmem:[#allocation7 + $0x258] sm:$0xff]
    %v459 = vld [vmem:[#allocation7 + $0x260] sm:$0xff]
    %v460 = vld [vmem:[#allocation7 + $0x268] sm:$0xff]
    %v461 = vld [vmem:[#allocation7 + $0x270] sm:$0xff]
    %v462 = vld [vmem:[#allocation7 + $0x278] sm:$0xff]
    %v463 = vld [vmem:[#allocation7 + $0x280] sm:$0xff]
    %v464 = vld [vmem:[#allocation7 + $0x288] sm:$0xff]
    %v465 = vld [vmem:[#allocation7 + $0x290] sm:$0xff]
    %v466 = vld [vmem:[#allocation7 + $0x298] sm:$0xff]
    %v467 = vld [vmem:[#allocation7 + $0x2a0] sm:$0xff]
    %v468 = vld [vmem:[#allocation7 + $0x2a8] sm:$0xff]
    %v469 = vld [vmem:[#allocation7 + $0x2b0] sm:$0xff]
    %v470 = vld [vmem:[#allocation7 + $0x2b8] sm:$0xff]
    %v471 = vld [vmem:[#allocation7 + $0x2c0] sm:$0xff]
    %v472 = vld [vmem:[#allocation7 + $0x2c8] sm:$0xff]
    %v473 = vld [vmem:[#allocation7 + $0x2d0] sm:$0xff]
    %v474 = vld [vmem:[#allocation7 + $0x2d8] sm:$0xff]
    %v475 = vld [vmem:[#allocation7 + $0x2e0] sm:$0xff]
    %v476 = vld [vmem:[#allocation7 + $0x2e8] sm:$0xff]
    %v477 = vld [vmem:[#allocation7 + $0x2f0] sm:$0xff]
    %v478 = vld [vmem:[#allocation7 + $0x2f8] sm:$0xff]
    %v479 = vld [vmem:[#allocation7 + $0x300] sm:$0xff]
    %v480 = vld [vmem:[#allocation7 + $0x308] sm:$0xff]
    %v481 = vld [vmem:[#allocation7 + $0x310] sm:$0xff]
    %v482 = vld [vmem:[#allocation7 + $0x318] sm:$0xff]
    %v483 = vld [vmem:[#allocation7 + $0x320] sm:$0xff]
    %v484 = vld [vmem:[#allocation7 + $0x328] sm:$0xff]
    %v485 = vld [vmem:[#allocation7 + $0x330] sm:$0xff]
    %v486 = vld [vmem:[#allocation7 + $0x338] sm:$0xff]
    %v487 = vld [vmem:[#allocation7 + $0x340] sm:$0xff]
    %v488 = vld [vmem:[#allocation7 + $0x348] sm:$0xff]
    %v489 = vld [vmem:[#allocation7 + $0x350] sm:$0xff]
    %v490 = vld [vmem:[#allocation7 + $0x358] sm:$0xff]
    %v491 = vld [vmem:[#allocation7 + $0x360] sm:$0xff]
    %v492 = vld [vmem:[#allocation7 + $0x368] sm:$0xff]
    %v493 = vld [vmem:[#allocation7 + $0x370] sm:$0xff]
    %v494 = vld [vmem:[#allocation7 + $0x378] sm:$0xff]
    %v495 = vld [vmem:[#allocation7 + $0x380] sm:$0xff]
    %v496 = vld [vmem:[#allocation7 + $0x388] sm:$0xff]
    %v497 = vld [vmem:[#allocation7 + $0x390] sm:$0xff]
    %v498 = vld [vmem:[#allocation7 + $0x398] sm:$0xff]
    %v499 = vld [vmem:[#allocation7 + $0x3a0] sm:$0xff]
    %v500 = vld [vmem:[#allocation7 + $0x3a8] sm:$0xff]
    %v501 = vld [vmem:[#allocation7 + $0x3b0] sm:$0xff]
    %v502 = vld [vmem:[#allocation7 + $0x3b8] sm:$0xff]
    %v503 = vld [vmem:[#allocation7 + $0x3c0] sm:$0xff]
    %v504 = vld [vmem:[#allocation7 + $0x3c8] sm:$0xff]
    %v505 = vld [vmem:[#allocation7 + $0x3d0] sm:$0xff]
    %v506 = vld [vmem:[#allocation7 + $0x3d8] sm:$0xff]
    %v507 = vld [vmem:[#allocation7 + $0x3e0] sm:$0xff]
    %v508 = vld [vmem:[#allocation7 + $0x3e8] sm:$0xff]
    %v509 = vld [vmem:[#allocation7 + $0x3f0] sm:$0xff]
    %v510 = vld [vmem:[#allocation7 + $0x3f8] sm:$0xff]
    %v511 = vperm.slane %v115, 1
    %v512 = vperm.slane %v115, 5
    %v513 = vperm.slane %v116, 1
    %v514 = vperm.slane %v116, 5
    %v519 = vperm.slane %v511, 1
    %v520 = vperm.slane %v512, 1
    %v521 = vperm.slane %v513, 1
    %v522 = vperm.slane %v514, 1
    %v651 = vunpack.c.l.b16 %v383
    %v652 = vunpack.c.h.b16 %v383
    %v653 = vunpack.c.l.b16 %v384
    %v654 = vunpack.c.h.b16 %v384
    %v655 = vunpack.c.l.b16 %v385
    %v656 = vunpack.c.h.b16 %v385
    %v657 = vunpack.c.l.b16 %v386
    %v658 = vunpack.c.h.b16 %v386
    %v659 = vunpack.c.l.b16 %v387
    %v660 = vunpack.c.h.b16 %v387
    %v661 = vunpack.c.l.b16 %v388
    %v662 = vunpack.c.h.b16 %v388
    %v663 = vunpack.c.l.b16 %v389
    %v664 = vunpack.c.h.b16 %v389
    %v665 = vunpack.c.l.b16 %v390
    %v666 = vunpack.c.h.b16 %v390
    %v667 = vunpack.c.l.b16 %v391
    %v668 = vunpack.c.h.b16 %v391
    %v669 = vunpack.c.l.b16 %v392
    %v670 = vunpack.c.h.b16 %v392
    %v671 = vunpack.c.l.b16 %v393
    %v672 = vunpack.c.h.b16 %v393
    %v673 = vunpack.c.l.b16 %v394
    %v674 = vunpack.c.h.b16 %v394
    %v675 = vunpack.c.l.b16 %v395
    %v676 = vunpack.c.h.b16 %v395
    %v677 = vunpack.c.l.b16 %v396
    %v678 = vunpack.c.h.b16 %v396
    %v679 = vunpack.c.l.b16 %v397
    %v680 = vunpack.c.h.b16 %v397
    %v681 = vunpack.c.l.b16 %v398
    %v682 = vunpack.c.h.b16 %v398
    %v683 = vunpack.c.l.b16 %v399
    %v684 = vunpack.c.h.b16 %v399
    %v685 = vunpack.c.l.b16 %v400
    %v686 = vunpack.c.h.b16 %v400
    %v687 = vunpack.c.l.b16 %v401
    %v688 = vunpack.c.h.b16 %v401
    %v689 = vunpack.c.l.b16 %v402
    %v690 = vunpack.c.h.b16 %v402
    %v691 = vunpack.c.l.b16 %v403
    %v692 = vunpack.c.h.b16 %v403
    %v693 = vunpack.c.l.b16 %v404
    %v694 = vunpack.c.h.b16 %v404
    %v695 = vunpack.c.l.b16 %v405
    %v696 = vunpack.c.h.b16 %v405
    %v697 = vunpack.c.l.b16 %v406
    %v698 = vunpack.c.h.b16 %v406
    %v699 = vunpack.c.l.b16 %v407
    %v700 = vunpack.c.h.b16 %v407
    %v701 = vunpack.c.l.b16 %v408
    %v702 = vunpack.c.h.b16 %v408
    %v703 = vunpack.c.l.b16 %v409
    %v704 = vunpack.c.h.b16 %v409
    %v705 = vunpack.c.l.b16 %v410
    %v706 = vunpack.c.h.b16 %v410
    %v707 = vunpack.c.l.b16 %v411
    %v708 = vunpack.c.h.b16 %v411
    %v709 = vunpack.c.l.b16 %v412
    %v710 = vunpack.c.h.b16 %v412
    %v711 = vunpack.c.l.b16 %v413
    %v712 = vunpack.c.h.b16 %v413
    %v713 = vunpack.c.l.b16 %v414
    %v714 = vunpack.c.h.b16 %v414
    %v715 = vunpack.c.l.b16 %v415
    %v716 = vunpack.c.h.b16 %v415
    %v717 = vunpack.c.l.b16 %v416
    %v718 = vunpack.c.h.b16 %v416
    %v719 = vunpack.c.l.b16 %v417
    %v720 = vunpack.c.h.b16 %v417
    %v721 = vunpack.c.l.b16 %v418
    %v722 = vunpack.c.h.b16 %v418
    %v723 = vunpack.c.l.b16 %v419
    %v724 = vunpack.c.h.b16 %v419
    %v725 = vunpack.c.l.b16 %v420
    %v726 = vunpack.c.h.b16 %v420
    %v727 = vunpack.c.l.b16 %v421
    %v728 = vunpack.c.h.b16 %v421
    %v729 = vunpack.c.l.b16 %v422
    %v730 = vunpack.c.h.b16 %v422
    %v731 = vunpack.c.l.b16 %v423
    %v732 = vunpack.c.h.b16 %v423
    %v733 = vunpack.c.l.b16 %v424
    %v734 = vunpack.c.h.b16 %v424
    %v735 = vunpack.c.l.b16 %v425
    %v736 = vunpack.c.h.b16 %v425
    %v737 = vunpack.c.l.b16 %v426
    %v738 = vunpack.c.h.b16 %v426
    %v739 = vunpack.c.l.b16 %v427
    %v740 = vunpack.c.h.b16 %v427
    %v741 = vunpack.c.l.b16 %v428
    %v742 = vunpack.c.h.b16 %v428
    %v743 = vunpack.c.l.b16 %v429
    %v744 = vunpack.c.h.b16 %v429
    %v745 = vunpack.c.l.b16 %v430
    %v746 = vunpack.c.h.b16 %v430
    %v747 = vunpack.c.l.b16 %v431
    %v748 = vunpack.c.h.b16 %v431
    %v749 = vunpack.c.l.b16 %v432
    %v750 = vunpack.c.h.b16 %v432
    %v751 = vunpack.c.l.b16 %v433
    %v752 = vunpack.c.h.b16 %v433
    %v753 = vunpack.c.l.b16 %v434
    %v754 = vunpack.c.h.b16 %v434
    %v755 = vunpack.c.l.b16 %v435
    %v756 = vunpack.c.h.b16 %v435
    %v757 = vunpack.c.l.b16 %v436
    %v758 = vunpack.c.h.b16 %v436
    %v759 = vunpack.c.l.b16 %v437
    %v760 = vunpack.c.h.b16 %v437
    %v761 = vunpack.c.l.b16 %v438
    %v762 = vunpack.c.h.b16 %v438
    %v763 = vunpack.c.l.b16 %v439
    %v764 = vunpack.c.h.b16 %v439
    %v765 = vunpack.c.l.b16 %v440
    %v766 = vunpack.c.h.b16 %v440
    %v767 = vunpack.c.l.b16 %v441
    %v768 = vunpack.c.h.b16 %v441
    %v769 = vunpack.c.l.b16 %v442
    %v770 = vunpack.c.h.b16 %v442
    %v771 = vunpack.c.l.b16 %v443
    %v772 = vunpack.c.h.b16 %v443
    %v773 = vunpack.c.l.b16 %v444
    %v774 = vunpack.c.h.b16 %v444
    %v775 = vunpack.c.l.b16 %v445
    %v776 = vunpack.c.h.b16 %v445
    %v777 = vunpack.c.l.b16 %v446
    %v778 = vunpack.c.h.b16 %v446
    %v779 = vunpack.c.l.b16 %v447
    %v780 = vunpack.c.h.b16 %v447
    %v781 = vunpack.c.l.b16 %v448
    %v782 = vunpack.c.h.b16 %v448
    %v783 = vunpack.c.l.b16 %v449
    %v784 = vunpack.c.h.b16 %v449
    %v785 = vunpack.c.l.b16 %v450
    %v786 = vunpack.c.h.b16 %v450
    %v787 = vunpack.c.l.b16 %v451
    %v788 = vunpack.c.h.b16 %v451
    %v789 = vunpack.c.l.b16 %v452
    %v790 = vunpack.c.h.b16 %v452
    %v791 = vunpack.c.l.b16 %v453
    %v792 = vunpack.c.h.b16 %v453
    %v793 = vunpack.c.l.b16 %v454
    %v794 = vunpack.c.h.b16 %v454
    %v795 = vunpack.c.l.b16 %v455
    %v796 = vunpack.c.h.b16 %v455
    %v797 = vunpack.c.l.b16 %v456
    %v798 = vunpack.c.h.b16 %v456
    %v799 = vunpack.c.l.b16 %v457
    %v800 = vunpack.c.h.b16 %v457
    %v801 = vunpack.c.l.b16 %v458
    %v802 = vunpack.c.h.b16 %v458
    %v803 = vunpack.c.l.b16 %v459
    %v804 = vunpack.c.h.b16 %v459
    %v805 = vunpack.c.l.b16 %v460
    %v806 = vunpack.c.h.b16 %v460
    %v807 = vunpack.c.l.b16 %v461
    %v808 = vunpack.c.h.b16 %v461
    %v809 = vunpack.c.l.b16 %v462
    %v810 = vunpack.c.h.b16 %v462
    %v811 = vunpack.c.l.b16 %v463
    %v812 = vunpack.c.h.b16 %v463
    %v813 = vunpack.c.l.b16 %v464
    %v814 = vunpack.c.h.b16 %v464
    %v815 = vunpack.c.l.b16 %v465
    %v816 = vunpack.c.h.b16 %v465
    %v817 = vunpack.c.l.b16 %v466
    %v818 = vunpack.c.h.b16 %v466
    %v819 = vunpack.c.l.b16 %v467
    %v820 = vunpack.c.h.b16 %v467
    %v821 = vunpack.c.l.b16 %v468
    %v822 = vunpack.c.h.b16 %v468
    %v823 = vunpack.c.l.b16 %v469
    %v824 = vunpack.c.h.b16 %v469
    %v825 = vunpack.c.l.b16 %v470
    %v826 = vunpack.c.h.b16 %v470
    %v827 = vunpack.c.l.b16 %v471
    %v828 = vunpack.c.h.b16 %v471
    %v829 = vunpack.c.l.b16 %v472
    %v830 = vunpack.c.h.b16 %v472
    %v831 = vunpack.c.l.b16 %v473
    %v832 = vunpack.c.h.b16 %v473
    %v833 = vunpack.c.l.b16 %v474
    %v834 = vunpack.c.h.b16 %v474
    %v835 = vunpack.c.l.b16 %v475
    %v836 = vunpack.c.h.b16 %v475
    %v837 = vunpack.c.l.b16 %v476
    %v838 = vunpack.c.h.b16 %v476
    %v839 = vunpack.c.l.b16 %v477
    %v840 = vunpack.c.h.b16 %v477
    %v841 = vunpack.c.l.b16 %v478
    %v842 = vunpack.c.h.b16 %v478
    %v843 = vunpack.c.l.b16 %v479
    %v844 = vunpack.c.h.b16 %v479
    %v845 = vunpack.c.l.b16 %v480
    %v846 = vunpack.c.h.b16 %v480
    %v847 = vunpack.c.l.b16 %v481
    %v848 = vunpack.c.h.b16 %v481
    %v849 = vunpack.c.l.b16 %v482
    %v850 = vunpack.c.h.b16 %v482
    %v851 = vunpack.c.l.b16 %v483
    %v852 = vunpack.c.h.b16 %v483
    %v853 = vunpack.c.l.b16 %v484
    %v854 = vunpack.c.h.b16 %v484
    %v855 = vunpack.c.l.b16 %v485
    %v856 = vunpack.c.h.b16 %v485
    %v857 = vunpack.c.l.b16 %v486
    %v858 = vunpack.c.h.b16 %v486
    %v859 = vunpack.c.l.b16 %v487
    %v860 = vunpack.c.h.b16 %v487
    %v861 = vunpack.c.l.b16 %v488
    %v862 = vunpack.c.h.b16 %v488
    %v863 = vunpack.c.l.b16 %v489
    %v864 = vunpack.c.h.b16 %v489
    %v865 = vunpack.c.l.b16 %v490
    %v866 = vunpack.c.h.b16 %v490
    %v867 = vunpack.c.l.b16 %v491
    %v868 = vunpack.c.h.b16 %v491
    %v869 = vunpack.c.l.b16 %v492
    %v870 = vunpack.c.h.b16 %v492
    %v871 = vunpack.c.l.b16 %v493
    %v872 = vunpack.c.h.b16 %v493
    %v873 = vunpack.c.l.b16 %v494
    %v874 = vunpack.c.h.b16 %v494
    %v875 = vunpack.c.l.b16 %v495
    %v876 = vunpack.c.h.b16 %v495
    %v877 = vunpack.c.l.b16 %v496
    %v878 = vunpack.c.h.b16 %v496
    %v879 = vunpack.c.l.b16 %v497
    %v880 = vunpack.c.h.b16 %v497
    %v881 = vunpack.c.l.b16 %v498
    %v882 = vunpack.c.h.b16 %v498
    %v883 = vunpack.c.l.b16 %v499
    %v884 = vunpack.c.h.b16 %v499
    %v885 = vunpack.c.l.b16 %v500
    %v886 = vunpack.c.h.b16 %v500
    %v887 = vunpack.c.l.b16 %v501
    %v888 = vunpack.c.h.b16 %v501
    %v889 = vunpack.c.l.b16 %v502
    %v890 = vunpack.c.h.b16 %v502
    %v891 = vunpack.c.l.b16 %v503
    %v892 = vunpack.c.h.b16 %v503
    %v893 = vunpack.c.l.b16 %v504
    %v894 = vunpack.c.h.b16 %v504
    %v895 = vunpack.c.l.b16 %v505
    %v896 = vunpack.c.h.b16 %v505
    %v897 = vunpack.c.l.b16 %v506
    %v898 = vunpack.c.h.b16 %v506
    %v899 = vunpack.c.l.b16 %v507
    %v900 = vunpack.c.h.b16 %v507
    %v901 = vunpack.c.l.b16 %v508
    %v902 = vunpack.c.h.b16 %v508
    %v903 = vunpack.c.l.b16 %v509
    %v904 = vunpack.c.h.b16 %v509
    %v905 = vunpack.c.l.b16 %v510
    %v906 = vunpack.c.h.b16 %v510
    %v907 = vpack.c.b16 %v655, %v651
    %v908 = vpack.c.b16 %v656, %v652
    %v909 = vpack.c.b16 %v657, %v653
    %v910 = vpack.c.b16 %v658, %v654
    %v911 = vpack.c.b16 %v663, %v659
    %v912 = vpack.c.b16 %v664, %v660
    %v913 = vpack.c.b16 %v665, %v661
    %v914 = vpack.c.b16 %v666, %v662
    %v915 = vpack.c.b16 %v671, %v667
    %v916 = vpack.c.b16 %v672, %v668
    %v917 = vpack.c.b16 %v673, %v669
    %v918 = vpack.c.b16 %v674, %v670
    %v919 = vpack.c.b16 %v679, %v675
    %v920 = vpack.c.b16 %v680, %v676
    %v921 = vpack.c.b16 %v681, %v677
    %v922 = vpack.c.b16 %v682, %v678
    %v923 = vpack.c.b16 %v687, %v683
    %v924 = vpack.c.b16 %v688, %v684
    %v925 = vpack.c.b16 %v689, %v685
    %v926 = vpack.c.b16 %v690, %v686
    %v927 = vpack.c.b16 %v695, %v691
    %v928 = vpack.c.b16 %v696, %v692
    %v929 = vpack.c.b16 %v697, %v693
    %v930 = vpack.c.b16 %v698, %v694
    %v931 = vpack.c.b16 %v703, %v699
    %v932 = vpack.c.b16 %v704, %v700
    %v933 = vpack.c.b16 %v705, %v701
    %v934 = vpack.c.b16 %v706, %v702
    %v935 = vpack.c.b16 %v711, %v707
    %v936 = vpack.c.b16 %v712, %v708
    %v937 = vpack.c.b16 %v713, %v709
    %v938 = vpack.c.b16 %v714, %v710
    %v939 = vpack.c.b16 %v719, %v715
    %v940 = vpack.c.b16 %v720, %v716
    %v941 = vpack.c.b16 %v721, %v717
    %v942 = vpack.c.b16 %v722, %v718
    %v943 = vpack.c.b16 %v727, %v723
    %v944 = vpack.c.b16 %v728, %v724
    %v945 = vpack.c.b16 %v729, %v725
    %v946 = vpack.c.b16 %v730, %v726
    %v947 = vpack.c.b16 %v735, %v731
    %v948 = vpack.c.b16 %v736, %v732
    %v949 = vpack.c.b16 %v737, %v733
    %v950 = vpack.c.b16 %v738, %v734
    %v951 = vpack.c.b16 %v743, %v739
    %v952 = vpack.c.b16 %v744, %v740
    %v953 = vpack.c.b16 %v745, %v741
    %v954 = vpack.c.b16 %v746, %v742
    %v955 = vpack.c.b16 %v751, %v747
    %v956 = vpack.c.b16 %v752, %v748
    %v957 = vpack.c.b16 %v753, %v749
    %v958 = vpack.c.b16 %v754, %v750
    %v959 = vpack.c.b16 %v759, %v755
    %v960 = vpack.c.b16 %v760, %v756
    %v961 = vpack.c.b16 %v761, %v757
    %v962 = vpack.c.b16 %v762, %v758
    %v963 = vpack.c.b16 %v767, %v763
    %v964 = vpack.c.b16 %v768, %v764
    %v965 = vpack.c.b16 %v769, %v765
    %v966 = vpack.c.b16 %v770, %v766
    %v967 = vpack.c.b16 %v775, %v771
    %v968 = vpack.c.b16 %v776, %v772
    %v969 = vpack.c.b16 %v777, %v773
    %v970 = vpack.c.b16 %v778, %v774
    %v971 = vpack.c.b16 %v783, %v779
    %v972 = vpack.c.b16 %v784, %v780
    %v973 = vpack.c.b16 %v785, %v781
    %v974 = vpack.c.b16 %v786, %v782
    %v975 = vpack.c.b16 %v791, %v787
    %v976 = vpack.c.b16 %v792, %v788
    %v977 = vpack.c.b16 %v793, %v789
    %v978 = vpack.c.b16 %v794, %v790
    %v979 = vpack.c.b16 %v799, %v795
    %v980 = vpack.c.b16 %v800, %v796
    %v981 = vpack.c.b16 %v801, %v797
    %v982 = vpack.c.b16 %v802, %v798
    %v983 = vpack.c.b16 %v807, %v803
    %v984 = vpack.c.b16 %v808, %v804
    %v985 = vpack.c.b16 %v809, %v805
    %v986 = vpack.c.b16 %v810, %v806
    %v987 = vpack.c.b16 %v815, %v811
    %v988 = vpack.c.b16 %v816, %v812
    %v989 = vpack.c.b16 %v817, %v813
    %v990 = vpack.c.b16 %v818, %v814
    %v991 = vpack.c.b16 %v823, %v819
    %v992 = vpack.c.b16 %v824, %v820
    %v993 = vpack.c.b16 %v825, %v821
    %v994 = vpack.c.b16 %v826, %v822
    %v995 = vpack.c.b16 %v831, %v827
    %v996 = vpack.c.b16 %v832, %v828
    %v997 = vpack.c.b16 %v833, %v829
    %v998 = vpack.c.b16 %v834, %v830
    %v999 = vpack.c.b16 %v839, %v835
    %v1000 = vpack.c.b16 %v840, %v836
    %v1001 = vpack.c.b16 %v841, %v837
    %v1002 = vpack.c.b16 %v842, %v838
    %v1003 = vpack.c.b16 %v847, %v843
    %v1004 = vpack.c.b16 %v848, %v844
    %v1005 = vpack.c.b16 %v849, %v845
    %v1006 = vpack.c.b16 %v850, %v846
    %v1007 = vpack.c.b16 %v855, %v851
    %v1008 = vpack.c.b16 %v856, %v852
    %v1009 = vpack.c.b16 %v857, %v853
    %v1010 = vpack.c.b16 %v858, %v854
    %v1011 = vpack.c.b16 %v863, %v859
    %v1012 = vpack.c.b16 %v864, %v860
    %v1013 = vpack.c.b16 %v865, %v861
    %v1014 = vpack.c.b16 %v866, %v862
    %v1015 = vpack.c.b16 %v871, %v867
    %v1016 = vpack.c.b16 %v872, %v868
    %v1017 = vpack.c.b16 %v873, %v869
    %v1018 = vpack.c.b16 %v874, %v870
    %v1019 = vpack.c.b16 %v879, %v875
    %v1020 = vpack.c.b16 %v880, %v876
    %v1021 = vpack.c.b16 %v881, %v877
    %v1022 = vpack.c.b16 %v882, %v878
    %v1023 = vpack.c.b16 %v887, %v883
    %v1024 = vpack.c.b16 %v888, %v884
    %v1025 = vpack.c.b16 %v889, %v885
    %v1026 = vpack.c.b16 %v890, %v886
    %v1027 = vpack.c.b16 %v895, %v891
    %v1028 = vpack.c.b16 %v896, %v892
    %v1029 = vpack.c.b16 %v897, %v893
    %v1030 = vpack.c.b16 %v898, %v894
    %v1031 = vpack.c.b16 %v903, %v899
    %v1032 = vpack.c.b16 %v904, %v900
    %v1033 = vpack.c.b16 %v905, %v901
    %v1034 = vpack.c.b16 %v906, %v902
    %1163 = vmatpush.bf16.msra.mxu0 %v935
    %1164 = vmatpush.bf16.msra.mxu0 %v931
    %1165 = vmatpush.bf16.msra.mxu0 %v927
    %1166 = vmatpush.bf16.msra.mxu0 %v923
    %1167 = vmatpush.bf16.msra.mxu0 %v919
    %1168 = vmatpush.bf16.msra.mxu0 %v915
    %1169 = vmatpush.bf16.msra.mxu0 %v911
    %1170 = vmatpush.bf16.msra.mxu0 %v907
    %1171 = vmatmul.bf16.gmra.mxu0 %v379
    %v1172 = vpop.f32.mrf.mxu0
    %v1173 = vadd.f32 %v519, %v1172
    %v1174 = vpop.f32.mrf.mxu0
    %1175 = vdwg.mxu0
    %1176 = vmatpush.bf16.msra.mxu0 %v967
    %1177 = vmatpush.bf16.msra.mxu0 %v963
    %1178 = vmatpush.bf16.msra.mxu0 %v959
    %1179 = vmatpush.bf16.msra.mxu0 %v955
    %1180 = vmatpush.bf16.msra.mxu0 %v951
    %1181 = vmatpush.bf16.msra.mxu0 %v947
    %1182 = vmatpush.bf16.msra.mxu0 %v943
    %1183 = vmatpush.bf16.msra.mxu0 %v939
    %1184 = vmatmul.bf16.gmra.mxu0 %v380
    %v1185 = vpop.f32.mrf.mxu0
    %v1186 = vadd.f32 %v1173, %v1185
    %v1187 = vpop.f32.mrf.mxu0
    %1188 = vdwg.mxu0
    %1189 = vmatpush.bf16.msra.mxu0 %v999
    %1190 = vmatpush.bf16.msra.mxu0 %v995
    %1191 = vmatpush.bf16.msra.mxu0 %v991
    %1192 = vmatpush.bf16.msra.mxu0 %v987
    %1193 = vmatpush.bf16.msra.mxu0 %v983
    %1194 = vmatpush.bf16.msra.mxu0 %v979
    %1195 = vmatpush.bf16.msra.mxu0 %v975
    %1196 = vmatpush.bf16.msra.mxu0 %v971
    %1197 = vmatmul.bf16.gmra.mxu0 %v381
    %v1198 = vpop.f32.mrf.mxu0
    %v1199 = vadd.f32 %v1186, %v1198
    %v1200 = vpop.f32.mrf.mxu0
    %1201 = vdwg.mxu0
    %1202 = vmatpush.bf16.msra.mxu0 %v1031
    %1203 = vmatpush.bf16.msra.mxu0 %v1027
    %1204 = vmatpush.bf16.msra.mxu0 %v1023
    %1205 = vmatpush.bf16.msra.mxu0 %v1019
    %1206 = vmatpush.bf16.msra.mxu0 %v1015
    %1207 = vmatpush.bf16.msra.mxu0 %v1011
    %1208 = vmatpush.bf16.msra.mxu0 %v1007
    %1209 = vmatpush.bf16.msra.mxu0 %v1003
    %1210 = vmatmul.bf16.gmra.mxu0 %v382
    %v1211 = vpop.f32.mrf.mxu0
    %v1212 = vadd.f32 %v1199, %v1211
    %v1213 = vpop.f32.mrf.mxu0
    %1214 = vdwg.mxu0
    %1215 = vmatpush.bf16.msra.mxu0 %v936
    %1216 = vmatpush.bf16.msra.mxu0 %v932
    %1217 = vmatpush.bf16.msra.mxu0 %v928
    %1218 = vmatpush.bf16.msra.mxu0 %v924
    %1219 = vmatpush.bf16.msra.mxu0 %v920
    %1220 = vmatpush.bf16.msra.mxu0 %v916
    %1221 = vmatpush.bf16.msra.mxu0 %v912
    %1222 = vmatpush.bf16.msra.mxu0 %v908
    %1223 = vmatmul.bf16.gmra.mxu0 %v379
    %v1224 = vpop.f32.mrf.mxu0
    %v1225 = vadd.f32 %v520, %v1224
    %v1226 = vpop.f32.mrf.mxu0
    %1227 = vdwg.mxu0
    %1228 = vmatpush.bf16.msra.mxu0 %v968
    %1229 = vmatpush.bf16.msra.mxu0 %v964
    %1230 = vmatpush.bf16.msra.mxu0 %v960
    %1231 = vmatpush.bf16.msra.mxu0 %v956
    %1232 = vmatpush.bf16.msra.mxu0 %v952
    %1233 = vmatpush.bf16.msra.mxu0 %v948
    %1234 = vmatpush.bf16.msra.mxu0 %v944
    %1235 = vmatpush.bf16.msra.mxu0 %v940
    %1236 = vmatmul.bf16.gmra.mxu0 %v380
    %v1237 = vpop.f32.mrf.mxu0
    %v1238 = vadd.f32 %v1225, %v1237
    %v1239 = vpop.f32.mrf.mxu0
    %1240 = vdwg.mxu0
    %1241 = vmatpush.bf16.msra.mxu0 %v1000
    %1242 = vmatpush.bf16.msra.mxu0 %v996
    %1243 = vmatpush.bf16.msra.mxu0 %v992
    %1244 = vmatpush.bf16.msra.mxu0 %v988
    %1245 = vmatpush.bf16.msra.mxu0 %v984
    %1246 = vmatpush.bf16.msra.mxu0 %v980
    %1247 = vmatpush.bf16.msra.mxu0 %v976
    %1248 = vmatpush.bf16.msra.mxu0 %v972
    %1249 = vmatmul.bf16.gmra.mxu0 %v381
    %v1250 = vpop.f32.mrf.mxu0
    %v1251 = vadd.f32 %v1238, %v1250
    %v1252 = vpop.f32.mrf.mxu0
    %1253 = vdwg.mxu0
    %1254 = vmatpush.bf16.msra.mxu0 %v1032
    %1255 = vmatpush.bf16.msra.mxu0 %v1028
    %1256 = vmatpush.bf16.msra.mxu0 %v1024
    %1257 = vmatpush.bf16.msra.mxu0 %v1020
    %1258 = vmatpush.bf16.msra.mxu0 %v1016
    %1259 = vmatpush.bf16.msra.mxu0 %v1012
    %1260 = vmatpush.bf16.msra.mxu0 %v1008
    %1261 = vmatpush.bf16.msra.mxu0 %v1004
    %1262 = vmatmul.bf16.gmra.mxu0 %v382
    %v1263 = vpop.f32.mrf.mxu0
    %v1264 = vadd.f32 %v1251, %v1263
    %v1265 = vpop.f32.mrf.mxu0
    %1266 = vdwg.mxu0
    %1267 = vmatpush.bf16.msra.mxu0 %v937
    %1268 = vmatpush.bf16.msra.mxu0 %v933
    %1269 = vmatpush.bf16.msra.mxu0 %v929
    %1270 = vmatpush.bf16.msra.mxu0 %v925
    %1271 = vmatpush.bf16.msra.mxu0 %v921
    %1272 = vmatpush.bf16.msra.mxu0 %v917
    %1273 = vmatpush.bf16.msra.mxu0 %v913
    %1274 = vmatpush.bf16.msra.mxu0 %v909
    %1275 = vmatmul.bf16.gmra.mxu0 %v379
    %v1276 = vpop.f32.mrf.mxu0
    %v1277 = vadd.f32 %v521, %v1276
    %v1278 = vpop.f32.mrf.mxu0
    %1279 = vdwg.mxu0
    %1280 = vmatpush.bf16.msra.mxu0 %v969
    %1281 = vmatpush.bf16.msra.mxu0 %v965
    %1282 = vmatpush.bf16.msra.mxu0 %v961
    %1283 = vmatpush.bf16.msra.mxu0 %v957
    %1284 = vmatpush.bf16.msra.mxu0 %v953
    %1285 = vmatpush.bf16.msra.mxu0 %v949
    %1286 = vmatpush.bf16.msra.mxu0 %v945
    %1287 = vmatpush.bf16.msra.mxu0 %v941
    %1288 = vmatmul.bf16.gmra.mxu0 %v380
    %v1289 = vpop.f32.mrf.mxu0
    %v1290 = vadd.f32 %v1277, %v1289
    %v1291 = vpop.f32.mrf.mxu0
    %1292 = vdwg.mxu0
    %1293 = vmatpush.bf16.msra.mxu0 %v1001
    %1294 = vmatpush.bf16.msra.mxu0 %v997
    %1295 = vmatpush.bf16.msra.mxu0 %v993
    %1296 = vmatpush.bf16.msra.mxu0 %v989
    %1297 = vmatpush.bf16.msra.mxu0 %v985
    %1298 = vmatpush.bf16.msra.mxu0 %v981
    %1299 = vmatpush.bf16.msra.mxu0 %v977
    %1300 = vmatpush.bf16.msra.mxu0 %v973
    %1301 = vmatmul.bf16.gmra.mxu0 %v381
    %v1302 = vpop.f32.mrf.mxu0
    %v1303 = vadd.f32 %v1290, %v1302
    %v1304 = vpop.f32.mrf.mxu0
    %1305 = vdwg.mxu0
    %1306 = vmatpush.bf16.msra.mxu0 %v1033
    %1307 = vmatpush.bf16.msra.mxu0 %v1029
    %1308 = vmatpush.bf16.msra.mxu0 %v1025
    %1309 = vmatpush.bf16.msra.mxu0 %v1021
    %1310 = vmatpush.bf16.msra.mxu0 %v1017
    %1311 = vmatpush.bf16.msra.mxu0 %v1013
    %1312 = vmatpush.bf16.msra.mxu0 %v1009
    %1313 = vmatpush.bf16.msra.mxu0 %v1005
    %1314 = vmatmul.bf16.gmra.mxu0 %v382
    %v1315 = vpop.f32.mrf.mxu0
    %v1316 = vadd.f32 %v1303, %v1315
    %v1317 = vpop.f32.mrf.mxu0
    %1318 = vdwg.mxu0
    %1319 = vmatpush.bf16.msra.mxu0 %v938
    %1320 = vmatpush.bf16.msra.mxu0 %v934
    %1321 = vmatpush.bf16.msra.mxu0 %v930
    %1322 = vmatpush.bf16.msra.mxu0 %v926
    %1323 = vmatpush.bf16.msra.mxu0 %v922
    %1324 = vmatpush.bf16.msra.mxu0 %v918
    %1325 = vmatpush.bf16.msra.mxu0 %v914
    %1326 = vmatpush.bf16.msra.mxu0 %v910
    %1327 = vmatmul.bf16.gmra.mxu0 %v379
    %v1328 = vpop.f32.mrf.mxu0
    %v1329 = vadd.f32 %v522, %v1328
    %v1330 = vpop.f32.mrf.mxu0
    %1331 = vdwg.mxu0
    %1332 = vmatpush.bf16.msra.mxu0 %v970
    %1333 = vmatpush.bf16.msra.mxu0 %v966
    %1334 = vmatpush.bf16.msra.mxu0 %v962
    %1335 = vmatpush.bf16.msra.mxu0 %v958
    %1336 = vmatpush.bf16.msra.mxu0 %v954
    %1337 = vmatpush.bf16.msra.mxu0 %v950
    %1338 = vmatpush.bf16.msra.mxu0 %v946
    %1339 = vmatpush.bf16.msra.mxu0 %v942
    %1340 = vmatmul.bf16.gmra.mxu0 %v380
    %v1341 = vpop.f32.mrf.mxu0
    %v1342 = vadd.f32 %v1329, %v1341
    %v1343 = vpop.f32.mrf.mxu0
    %1344 = vdwg.mxu0
    %1345 = vmatpush.bf16.msra.mxu0 %v1002
    %1346 = vmatpush.bf16.msra.mxu0 %v998
    %1347 = vmatpush.bf16.msra.mxu0 %v994
    %1348 = vmatpush.bf16.msra.mxu0 %v990
    %1349 = vmatpush.bf16.msra.mxu0 %v986
    %1350 = vmatpush.bf16.msra.mxu0 %v982
    %1351 = vmatpush.bf16.msra.mxu0 %v978
    %1352 = vmatpush.bf16.msra.mxu0 %v974
    %1353 = vmatmul.bf16.gmra.mxu0 %v381
    %v1354 = vpop.f32.mrf.mxu0
    %v1355 = vadd.f32 %v1342, %v1354
    %v1356 = vpop.f32.mrf.mxu0
    %1357 = vdwg.mxu0
    %1358 = vmatpush.bf16.msra.mxu0 %v1034
    %1359 = vmatpush.bf16.msra.mxu0 %v1030
    %1360 = vmatpush.bf16.msra.mxu0 %v1026
    %1361 = vmatpush.bf16.msra.mxu0 %v1022
    %1362 = vmatpush.bf16.msra.mxu0 %v1018
    %1363 = vmatpush.bf16.msra.mxu0 %v1014
    %1364 = vmatpush.bf16.msra.mxu0 %v1010
    %1365 = vmatpush.bf16.msra.mxu0 %v1006
    %1366 = vmatmul.bf16.gmra.mxu0 %v382
    %v1367 = vpop.f32.mrf.mxu0
    %v1368 = vadd.f32 %v1355, %v1367
    %v1369 = vpop.f32.mrf.mxu0
    %1370 = vdwg.mxu0
    %v1371 = vmax.f32 %v1212, 0.0
    %v1372 = vmax.f32 %v1264, 0.0
    %v1373 = vmax.f32 %v1316, 0.0
    %v1374 = vmax.f32 %v1368, 0.0
    %v1375 = vpack.c.bf16 %v1371, %v1371
    %v1376 = vpack.c.bf16 %v1372, %v1372
    %v1377 = vpack.c.bf16 %v1373, %v1373
    %v1378 = vpack.c.bf16 %v1374, %v1374
    %v1379 = vld [vmem:[#allocation8] sm:$0xff]
    %v1380 = vld [vmem:[#allocation8 + $0x8] sm:$0xff]
    %v1381 = vld [vmem:[#allocation8 + $0x10] sm:$0xff]
    %v1382 = vld [vmem:[#allocation8 + $0x18] sm:$0xff]
    %v1383 = vld [vmem:[#allocation8 + $0x20] sm:$0xff]
    %v1384 = vld [vmem:[#allocation8 + $0x28] sm:$0xff]
    %v1385 = vld [vmem:[#allocation8 + $0x30] sm:$0xff]
    %v1386 = vld [vmem:[#allocation8 + $0x38] sm:$0xff]
    %v1387 = vld [vmem:[#allocation8 + $0x40] sm:$0xff]
    %v1388 = vld [vmem:[#allocation8 + $0x48] sm:$0xff]
    %v1389 = vld [vmem:[#allocation8 + $0x50] sm:$0xff]
    %v1390 = vld [vmem:[#allocation8 + $0x58] sm:$0xff]
    %v1391 = vld [vmem:[#allocation8 + $0x60] sm:$0xff]
    %v1392 = vld [vmem:[#allocation8 + $0x68] sm:$0xff]
    %v1393 = vld [vmem:[#allocation8 + $0x70] sm:$0xff]
    %v1394 = vld [vmem:[#allocation8 + $0x78] sm:$0xff]
    %v1395 = vld [vmem:[#allocation8 + $0x80] sm:$0xff]
    %v1396 = vld [vmem:[#allocation8 + $0x88] sm:$0xff]
    %v1397 = vld [vmem:[#allocation8 + $0x90] sm:$0xff]
    %v1398 = vld [vmem:[#allocation8 + $0x98] sm:$0xff]
    %v1399 = vld [vmem:[#allocation8 + $0xa0] sm:$0xff]
    %v1400 = vld [vmem:[#allocation8 + $0xa8] sm:$0xff]
    %v1401 = vld [vmem:[#allocation8 + $0xb0] sm:$0xff]
    %v1402 = vld [vmem:[#allocation8 + $0xb8] sm:$0xff]
    %v1403 = vld [vmem:[#allocation8 + $0xc0] sm:$0xff]
    %v1404 = vld [vmem:[#allocation8 + $0xc8] sm:$0xff]
    %v1405 = vld [vmem:[#allocation8 + $0xd0] sm:$0xff]
    %v1406 = vld [vmem:[#allocation8 + $0xd8] sm:$0xff]
    %v1407 = vld [vmem:[#allocation8 + $0xe0] sm:$0xff]
    %v1408 = vld [vmem:[#allocation8 + $0xe8] sm:$0xff]
    %v1409 = vld [vmem:[#allocation8 + $0xf0] sm:$0xff]
    %v1410 = vld [vmem:[#allocation8 + $0xf8] sm:$0xff]
    %v1411 = vld [vmem:[#allocation8 + $0x100] sm:$0xff]
    %v1412 = vld [vmem:[#allocation8 + $0x108] sm:$0xff]
    %v1413 = vld [vmem:[#allocation8 + $0x110] sm:$0xff]
    %v1414 = vld [vmem:[#allocation8 + $0x118] sm:$0xff]
    %v1415 = vld [vmem:[#allocation8 + $0x120] sm:$0xff]
    %v1416 = vld [vmem:[#allocation8 + $0x128] sm:$0xff]
    %v1417 = vld [vmem:[#allocation8 + $0x130] sm:$0xff]
    %v1418 = vld [vmem:[#allocation8 + $0x138] sm:$0xff]
    %v1419 = vld [vmem:[#allocation8 + $0x140] sm:$0xff]
    %v1420 = vld [vmem:[#allocation8 + $0x148] sm:$0xff]
    %v1421 = vld [vmem:[#allocation8 + $0x150] sm:$0xff]
    %v1422 = vld [vmem:[#allocation8 + $0x158] sm:$0xff]
    %v1423 = vld [vmem:[#allocation8 + $0x160] sm:$0xff]
    %v1424 = vld [vmem:[#allocation8 + $0x168] sm:$0xff]
    %v1425 = vld [vmem:[#allocation8 + $0x170] sm:$0xff]
    %v1426 = vld [vmem:[#allocation8 + $0x178] sm:$0xff]
    %v1427 = vld [vmem:[#allocation8 + $0x180] sm:$0xff]
    %v1428 = vld [vmem:[#allocation8 + $0x188] sm:$0xff]
    %v1429 = vld [vmem:[#allocation8 + $0x190] sm:$0xff]
    %v1430 = vld [vmem:[#allocation8 + $0x198] sm:$0xff]
    %v1431 = vld [vmem:[#allocation8 + $0x1a0] sm:$0xff]
    %v1432 = vld [vmem:[#allocation8 + $0x1a8] sm:$0xff]
    %v1433 = vld [vmem:[#allocation8 + $0x1b0] sm:$0xff]
    %v1434 = vld [vmem:[#allocation8 + $0x1b8] sm:$0xff]
    %v1435 = vld [vmem:[#allocation8 + $0x1c0] sm:$0xff]
    %v1436 = vld [vmem:[#allocation8 + $0x1c8] sm:$0xff]
    %v1437 = vld [vmem:[#allocation8 + $0x1d0] sm:$0xff]
    %v1438 = vld [vmem:[#allocation8 + $0x1d8] sm:$0xff]
    %v1439 = vld [vmem:[#allocation8 + $0x1e0] sm:$0xff]
    %v1440 = vld [vmem:[#allocation8 + $0x1e8] sm:$0xff]
    %v1441 = vld [vmem:[#allocation8 + $0x1f0] sm:$0xff]
    %v1442 = vld [vmem:[#allocation8 + $0x1f8] sm:$0xff]
    %v1443 = vld [vmem:[#allocation8 + $0x200] sm:$0xff]
    %v1444 = vld [vmem:[#allocation8 + $0x208] sm:$0xff]
    %v1445 = vld [vmem:[#allocation8 + $0x210] sm:$0xff]
    %v1446 = vld [vmem:[#allocation8 + $0x218] sm:$0xff]
    %v1447 = vld [vmem:[#allocation8 + $0x220] sm:$0xff]
    %v1448 = vld [vmem:[#allocation8 + $0x228] sm:$0xff]
    %v1449 = vld [vmem:[#allocation8 + $0x230] sm:$0xff]
    %v1450 = vld [vmem:[#allocation8 + $0x238] sm:$0xff]
    %v1451 = vld [vmem:[#allocation8 + $0x240] sm:$0xff]
    %v1452 = vld [vmem:[#allocation8 + $0x248] sm:$0xff]
    %v1453 = vld [vmem:[#allocation8 + $0x250] sm:$0xff]
    %v1454 = vld [vmem:[#allocation8 + $0x258] sm:$0xff]
    %v1455 = vld [vmem:[#allocation8 + $0x260] sm:$0xff]
    %v1456 = vld [vmem:[#allocation8 + $0x268] sm:$0xff]
    %v1457 = vld [vmem:[#allocation8 + $0x270] sm:$0xff]
    %v1458 = vld [vmem:[#allocation8 + $0x278] sm:$0xff]
    %v1459 = vld [vmem:[#allocation8 + $0x280] sm:$0xff]
    %v1460 = vld [vmem:[#allocation8 + $0x288] sm:$0xff]
    %v1461 = vld [vmem:[#allocation8 + $0x290] sm:$0xff]
    %v1462 = vld [vmem:[#allocation8 + $0x298] sm:$0xff]
    %v1463 = vld [vmem:[#allocation8 + $0x2a0] sm:$0xff]
    %v1464 = vld [vmem:[#allocation8 + $0x2a8] sm:$0xff]
    %v1465 = vld [vmem:[#allocation8 + $0x2b0] sm:$0xff]
    %v1466 = vld [vmem:[#allocation8 + $0x2b8] sm:$0xff]
    %v1467 = vld [vmem:[#allocation8 + $0x2c0] sm:$0xff]
    %v1468 = vld [vmem:[#allocation8 + $0x2c8] sm:$0xff]
    %v1469 = vld [vmem:[#allocation8 + $0x2d0] sm:$0xff]
    %v1470 = vld [vmem:[#allocation8 + $0x2d8] sm:$0xff]
    %v1471 = vld [vmem:[#allocation8 + $0x2e0] sm:$0xff]
    %v1472 = vld [vmem:[#allocation8 + $0x2e8] sm:$0xff]
    %v1473 = vld [vmem:[#allocation8 + $0x2f0] sm:$0xff]
    %v1474 = vld [vmem:[#allocation8 + $0x2f8] sm:$0xff]
    %v1475 = vld [vmem:[#allocation8 + $0x300] sm:$0xff]
    %v1476 = vld [vmem:[#allocation8 + $0x308] sm:$0xff]
    %v1477 = vld [vmem:[#allocation8 + $0x310] sm:$0xff]
    %v1478 = vld [vmem:[#allocation8 + $0x318] sm:$0xff]
    %v1479 = vld [vmem:[#allocation8 + $0x320] sm:$0xff]
    %v1480 = vld [vmem:[#allocation8 + $0x328] sm:$0xff]
    %v1481 = vld [vmem:[#allocation8 + $0x330] sm:$0xff]
    %v1482 = vld [vmem:[#allocation8 + $0x338] sm:$0xff]
    %v1483 = vld [vmem:[#allocation8 + $0x340] sm:$0xff]
    %v1484 = vld [vmem:[#allocation8 + $0x348] sm:$0xff]
    %v1485 = vld [vmem:[#allocation8 + $0x350] sm:$0xff]
    %v1486 = vld [vmem:[#allocation8 + $0x358] sm:$0xff]
    %v1487 = vld [vmem:[#allocation8 + $0x360] sm:$0xff]
    %v1488 = vld [vmem:[#allocation8 + $0x368] sm:$0xff]
    %v1489 = vld [vmem:[#allocation8 + $0x370] sm:$0xff]
    %v1490 = vld [vmem:[#allocation8 + $0x378] sm:$0xff]
    %v1491 = vld [vmem:[#allocation8 + $0x380] sm:$0xff]
    %v1492 = vld [vmem:[#allocation8 + $0x388] sm:$0xff]
    %v1493 = vld [vmem:[#allocation8 + $0x390] sm:$0xff]
    %v1494 = vld [vmem:[#allocation8 + $0x398] sm:$0xff]
    %v1495 = vld [vmem:[#allocation8 + $0x3a0] sm:$0xff]
    %v1496 = vld [vmem:[#allocation8 + $0x3a8] sm:$0xff]
    %v1497 = vld [vmem:[#allocation8 + $0x3b0] sm:$0xff]
    %v1498 = vld [vmem:[#allocation8 + $0x3b8] sm:$0xff]
    %v1499 = vld [vmem:[#allocation8 + $0x3c0] sm:$0xff]
    %v1500 = vld [vmem:[#allocation8 + $0x3c8] sm:$0xff]
    %v1501 = vld [vmem:[#allocation8 + $0x3d0] sm:$0xff]
    %v1502 = vld [vmem:[#allocation8 + $0x3d8] sm:$0xff]
    %v1503 = vld [vmem:[#allocation8 + $0x3e0] sm:$0xff]
    %v1504 = vld [vmem:[#allocation8 + $0x3e8] sm:$0xff]
    %v1505 = vld [vmem:[#allocation8 + $0x3f0] sm:$0xff]
    %v1506 = vld [vmem:[#allocation8 + $0x3f8] sm:$0xff]
    %v1507 = vperm.slane %v115, 2
    %v1508 = vperm.slane %v115, 6
    %v1509 = vperm.slane %v116, 2
    %v1510 = vperm.slane %v116, 6
    %v1515 = vperm.slane %v1507, 2
    %v1516 = vperm.slane %v1508, 2
    %v1517 = vperm.slane %v1509, 2
    %v1518 = vperm.slane %v1510, 2
    %v1647 = vunpack.c.l.b16 %v1379
    %v1648 = vunpack.c.h.b16 %v1379
    %v1649 = vunpack.c.l.b16 %v1380
    %v1650 = vunpack.c.h.b16 %v1380
    %v1651 = vunpack.c.l.b16 %v1381
    %v1652 = vunpack.c.h.b16 %v1381
    %v1653 = vunpack.c.l.b16 %v1382
    %v1654 = vunpack.c.h.b16 %v1382
    %v1655 = vunpack.c.l.b16 %v1383
    %v1656 = vunpack.c.h.b16 %v1383
    %v1657 = vunpack.c.l.b16 %v1384
    %v1658 = vunpack.c.h.b16 %v1384
    %v1659 = vunpack.c.l.b16 %v1385
    %v1660 = vunpack.c.h.b16 %v1385
    %v1661 = vunpack.c.l.b16 %v1386
    %v1662 = vunpack.c.h.b16 %v1386
    %v1663 = vunpack.c.l.b16 %v1387
    %v1664 = vunpack.c.h.b16 %v1387
    %v1665 = vunpack.c.l.b16 %v1388
    %v1666 = vunpack.c.h.b16 %v1388
    %v1667 = vunpack.c.l.b16 %v1389
    %v1668 = vunpack.c.h.b16 %v1389
    %v1669 = vunpack.c.l.b16 %v1390
    %v1670 = vunpack.c.h.b16 %v1390
    %v1671 = vunpack.c.l.b16 %v1391
    %v1672 = vunpack.c.h.b16 %v1391
    %v1673 = vunpack.c.l.b16 %v1392
    %v1674 = vunpack.c.h.b16 %v1392
    %v1675 = vunpack.c.l.b16 %v1393
    %v1676 = vunpack.c.h.b16 %v1393
    %v1677 = vunpack.c.l.b16 %v1394
    %v1678 = vunpack.c.h.b16 %v1394
    %v1679 = vunpack.c.l.b16 %v1395
    %v1680 = vunpack.c.h.b16 %v1395
    %v1681 = vunpack.c.l.b16 %v1396
    %v1682 = vunpack.c.h.b16 %v1396
    %v1683 = vunpack.c.l.b16 %v1397
    %v1684 = vunpack.c.h.b16 %v1397
    %v1685 = vunpack.c.l.b16 %v1398
    %v1686 = vunpack.c.h.b16 %v1398
    %v1687 = vunpack.c.l.b16 %v1399
    %v1688 = vunpack.c.h.b16 %v1399
    %v1689 = vunpack.c.l.b16 %v1400
    %v1690 = vunpack.c.h.b16 %v1400
    %v1691 = vunpack.c.l.b16 %v1401
    %v1692 = vunpack.c.h.b16 %v1401
    %v1693 = vunpack.c.l.b16 %v1402
    %v1694 = vunpack.c.h.b16 %v1402
    %v1695 = vunpack.c.l.b16 %v1403
    %v1696 = vunpack.c.h.b16 %v1403
    %v1697 = vunpack.c.l.b16 %v1404
    %v1698 = vunpack.c.h.b16 %v1404
    %v1699 = vunpack.c.l.b16 %v1405
    %v1700 = vunpack.c.h.b16 %v1405
    %v1701 = vunpack.c.l.b16 %v1406
    %v1702 = vunpack.c.h.b16 %v1406
    %v1703 = vunpack.c.l.b16 %v1407
    %v1704 = vunpack.c.h.b16 %v1407
    %v1705 = vunpack.c.l.b16 %v1408
    %v1706 = vunpack.c.h.b16 %v1408
    %v1707 = vunpack.c.l.b16 %v1409
    %v1708 = vunpack.c.h.b16 %v1409
    %v1709 = vunpack.c.l.b16 %v1410
    %v1710 = vunpack.c.h.b16 %v1410
    %v1711 = vunpack.c.l.b16 %v1411
    %v1712 = vunpack.c.h.b16 %v1411
    %v1713 = vunpack.c.l.b16 %v1412
    %v1714 = vunpack.c.h.b16 %v1412
    %v1715 = vunpack.c.l.b16 %v1413
    %v1716 = vunpack.c.h.b16 %v1413
    %v1717 = vunpack.c.l.b16 %v1414
    %v1718 = vunpack.c.h.b16 %v1414
    %v1719 = vunpack.c.l.b16 %v1415
    %v1720 = vunpack.c.h.b16 %v1415
    %v1721 = vunpack.c.l.b16 %v1416
    %v1722 = vunpack.c.h.b16 %v1416
    %v1723 = vunpack.c.l.b16 %v1417
    %v1724 = vunpack.c.h.b16 %v1417
    %v1725 = vunpack.c.l.b16 %v1418
    %v1726 = vunpack.c.h.b16 %v1418
    %v1727 = vunpack.c.l.b16 %v1419
    %v1728 = vunpack.c.h.b16 %v1419
    %v1729 = vunpack.c.l.b16 %v1420
    %v1730 = vunpack.c.h.b16 %v1420
    %v1731 = vunpack.c.l.b16 %v1421
    %v1732 = vunpack.c.h.b16 %v1421
    %v1733 = vunpack.c.l.b16 %v1422
    %v1734 = vunpack.c.h.b16 %v1422
    %v1735 = vunpack.c.l.b16 %v1423
    %v1736 = vunpack.c.h.b16 %v1423
    %v1737 = vunpack.c.l.b16 %v1424
    %v1738 = vunpack.c.h.b16 %v1424
    %v1739 = vunpack.c.l.b16 %v1425
    %v1740 = vunpack.c.h.b16 %v1425
    %v1741 = vunpack.c.l.b16 %v1426
    %v1742 = vunpack.c.h.b16 %v1426
    %v1743 = vunpack.c.l.b16 %v1427
    %v1744 = vunpack.c.h.b16 %v1427
    %v1745 = vunpack.c.l.b16 %v1428
    %v1746 = vunpack.c.h.b16 %v1428
    %v1747 = vunpack.c.l.b16 %v1429
    %v1748 = vunpack.c.h.b16 %v1429
    %v1749 = vunpack.c.l.b16 %v1430
    %v1750 = vunpack.c.h.b16 %v1430
    %v1751 = vunpack.c.l.b16 %v1431
    %v1752 = vunpack.c.h.b16 %v1431
    %v1753 = vunpack.c.l.b16 %v1432
    %v1754 = vunpack.c.h.b16 %v1432
    %v1755 = vunpack.c.l.b16 %v1433
    %v1756 = vunpack.c.h.b16 %v1433
    %v1757 = vunpack.c.l.b16 %v1434
    %v1758 = vunpack.c.h.b16 %v1434
    %v1759 = vunpack.c.l.b16 %v1435
    %v1760 = vunpack.c.h.b16 %v1435
    %v1761 = vunpack.c.l.b16 %v1436
    %v1762 = vunpack.c.h.b16 %v1436
    %v1763 = vunpack.c.l.b16 %v1437
    %v1764 = vunpack.c.h.b16 %v1437
    %v1765 = vunpack.c.l.b16 %v1438
    %v1766 = vunpack.c.h.b16 %v1438
    %v1767 = vunpack.c.l.b16 %v1439
    %v1768 = vunpack.c.h.b16 %v1439
    %v1769 = vunpack.c.l.b16 %v1440
    %v1770 = vunpack.c.h.b16 %v1440
    %v1771 = vunpack.c.l.b16 %v1441
    %v1772 = vunpack.c.h.b16 %v1441
    %v1773 = vunpack.c.l.b16 %v1442
    %v1774 = vunpack.c.h.b16 %v1442
    %v1775 = vunpack.c.l.b16 %v1443
    %v1776 = vunpack.c.h.b16 %v1443
    %v1777 = vunpack.c.l.b16 %v1444
    %v1778 = vunpack.c.h.b16 %v1444
    %v1779 = vunpack.c.l.b16 %v1445
    %v1780 = vunpack.c.h.b16 %v1445
    %v1781 = vunpack.c.l.b16 %v1446
    %v1782 = vunpack.c.h.b16 %v1446
    %v1783 = vunpack.c.l.b16 %v1447
    %v1784 = vunpack.c.h.b16 %v1447
    %v1785 = vunpack.c.l.b16 %v1448
    %v1786 = vunpack.c.h.b16 %v1448
    %v1787 = vunpack.c.l.b16 %v1449
    %v1788 = vunpack.c.h.b16 %v1449
    %v1789 = vunpack.c.l.b16 %v1450
    %v1790 = vunpack.c.h.b16 %v1450
    %v1791 = vunpack.c.l.b16 %v1451
    %v1792 = vunpack.c.h.b16 %v1451
    %v1793 = vunpack.c.l.b16 %v1452
    %v1794 = vunpack.c.h.b16 %v1452
    %v1795 = vunpack.c.l.b16 %v1453
    %v1796 = vunpack.c.h.b16 %v1453
    %v1797 = vunpack.c.l.b16 %v1454
    %v1798 = vunpack.c.h.b16 %v1454
    %v1799 = vunpack.c.l.b16 %v1455
    %v1800 = vunpack.c.h.b16 %v1455
    %v1801 = vunpack.c.l.b16 %v1456
    %v1802 = vunpack.c.h.b16 %v1456
    %v1803 = vunpack.c.l.b16 %v1457
    %v1804 = vunpack.c.h.b16 %v1457
    %v1805 = vunpack.c.l.b16 %v1458
    %v1806 = vunpack.c.h.b16 %v1458
    %v1807 = vunpack.c.l.b16 %v1459
    %v1808 = vunpack.c.h.b16 %v1459
    %v1809 = vunpack.c.l.b16 %v1460
    %v1810 = vunpack.c.h.b16 %v1460
    %v1811 = vunpack.c.l.b16 %v1461
    %v1812 = vunpack.c.h.b16 %v1461
    %v1813 = vunpack.c.l.b16 %v1462
    %v1814 = vunpack.c.h.b16 %v1462
    %v1815 = vunpack.c.l.b16 %v1463
    %v1816 = vunpack.c.h.b16 %v1463
    %v1817 = vunpack.c.l.b16 %v1464
    %v1818 = vunpack.c.h.b16 %v1464
    %v1819 = vunpack.c.l.b16 %v1465
    %v1820 = vunpack.c.h.b16 %v1465
    %v1821 = vunpack.c.l.b16 %v1466
    %v1822 = vunpack.c.h.b16 %v1466
    %v1823 = vunpack.c.l.b16 %v1467
    %v1824 = vunpack.c.h.b16 %v1467
    %v1825 = vunpack.c.l.b16 %v1468
    %v1826 = vunpack.c.h.b16 %v1468
    %v1827 = vunpack.c.l.b16 %v1469
    %v1828 = vunpack.c.h.b16 %v1469
    %v1829 = vunpack.c.l.b16 %v1470
    %v1830 = vunpack.c.h.b16 %v1470
    %v1831 = vunpack.c.l.b16 %v1471
    %v1832 = vunpack.c.h.b16 %v1471
    %v1833 = vunpack.c.l.b16 %v1472
    %v1834 = vunpack.c.h.b16 %v1472
    %v1835 = vunpack.c.l.b16 %v1473
    %v1836 = vunpack.c.h.b16 %v1473
    %v1837 = vunpack.c.l.b16 %v1474
    %v1838 = vunpack.c.h.b16 %v1474
    %v1839 = vunpack.c.l.b16 %v1475
    %v1840 = vunpack.c.h.b16 %v1475
    %v1841 = vunpack.c.l.b16 %v1476
    %v1842 = vunpack.c.h.b16 %v1476
    %v1843 = vunpack.c.l.b16 %v1477
    %v1844 = vunpack.c.h.b16 %v1477
    %v1845 = vunpack.c.l.b16 %v1478
    %v1846 = vunpack.c.h.b16 %v1478
    %v1847 = vunpack.c.l.b16 %v1479
    %v1848 = vunpack.c.h.b16 %v1479
    %v1849 = vunpack.c.l.b16 %v1480
    %v1850 = vunpack.c.h.b16 %v1480
    %v1851 = vunpack.c.l.b16 %v1481
    %v1852 = vunpack.c.h.b16 %v1481
    %v1853 = vunpack.c.l.b16 %v1482
    %v1854 = vunpack.c.h.b16 %v1482
    %v1855 = vunpack.c.l.b16 %v1483
    %v1856 = vunpack.c.h.b16 %v1483
    %v1857 = vunpack.c.l.b16 %v1484
    %v1858 = vunpack.c.h.b16 %v1484
    %v1859 = vunpack.c.l.b16 %v1485
    %v1860 = vunpack.c.h.b16 %v1485
    %v1861 = vunpack.c.l.b16 %v1486
    %v1862 = vunpack.c.h.b16 %v1486
    %v1863 = vunpack.c.l.b16 %v1487
    %v1864 = vunpack.c.h.b16 %v1487
    %v1865 = vunpack.c.l.b16 %v1488
    %v1866 = vunpack.c.h.b16 %v1488
    %v1867 = vunpack.c.l.b16 %v1489
    %v1868 = vunpack.c.h.b16 %v1489
    %v1869 = vunpack.c.l.b16 %v1490
    %v1870 = vunpack.c.h.b16 %v1490
    %v1871 = vunpack.c.l.b16 %v1491
    %v1872 = vunpack.c.h.b16 %v1491
    %v1873 = vunpack.c.l.b16 %v1492
    %v1874 = vunpack.c.h.b16 %v1492
    %v1875 = vunpack.c.l.b16 %v1493
    %v1876 = vunpack.c.h.b16 %v1493
    %v1877 = vunpack.c.l.b16 %v1494
    %v1878 = vunpack.c.h.b16 %v1494
    %v1879 = vunpack.c.l.b16 %v1495
    %v1880 = vunpack.c.h.b16 %v1495
    %v1881 = vunpack.c.l.b16 %v1496
    %v1882 = vunpack.c.h.b16 %v1496
    %v1883 = vunpack.c.l.b16 %v1497
    %v1884 = vunpack.c.h.b16 %v1497
    %v1885 = vunpack.c.l.b16 %v1498
    %v1886 = vunpack.c.h.b16 %v1498
    %v1887 = vunpack.c.l.b16 %v1499
    %v1888 = vunpack.c.h.b16 %v1499
    %v1889 = vunpack.c.l.b16 %v1500
    %v1890 = vunpack.c.h.b16 %v1500
    %v1891 = vunpack.c.l.b16 %v1501
    %v1892 = vunpack.c.h.b16 %v1501
    %v1893 = vunpack.c.l.b16 %v1502
    %v1894 = vunpack.c.h.b16 %v1502
    %v1895 = vunpack.c.l.b16 %v1503
    %v1896 = vunpack.c.h.b16 %v1503
    %v1897 = vunpack.c.l.b16 %v1504
    %v1898 = vunpack.c.h.b16 %v1504
    %v1899 = vunpack.c.l.b16 %v1505
    %v1900 = vunpack.c.h.b16 %v1505
    %v1901 = vunpack.c.l.b16 %v1506
    %v1902 = vunpack.c.h.b16 %v1506
    %v1903 = vpack.c.b16 %v1651, %v1647
    %v1904 = vpack.c.b16 %v1652, %v1648
    %v1905 = vpack.c.b16 %v1653, %v1649
    %v1906 = vpack.c.b16 %v1654, %v1650
    %v1907 = vpack.c.b16 %v1659, %v1655
    %v1908 = vpack.c.b16 %v1660, %v1656
    %v1909 = vpack.c.b16 %v1661, %v1657
    %v1910 = vpack.c.b16 %v1662, %v1658
    %v1911 = vpack.c.b16 %v1667, %v1663
    %v1912 = vpack.c.b16 %v1668, %v1664
    %v1913 = vpack.c.b16 %v1669, %v1665
    %v1914 = vpack.c.b16 %v1670, %v1666
    %v1915 = vpack.c.b16 %v1675, %v1671
    %v1916 = vpack.c.b16 %v1676, %v1672
    %v1917 = vpack.c.b16 %v1677, %v1673
    %v1918 = vpack.c.b16 %v1678, %v1674
    %v1919 = vpack.c.b16 %v1683, %v1679
    %v1920 = vpack.c.b16 %v1684, %v1680
    %v1921 = vpack.c.b16 %v1685, %v1681
    %v1922 = vpack.c.b16 %v1686, %v1682
    %v1923 = vpack.c.b16 %v1691, %v1687
    %v1924 = vpack.c.b16 %v1692, %v1688
    %v1925 = vpack.c.b16 %v1693, %v1689
    %v1926 = vpack.c.b16 %v1694, %v1690
    %v1927 = vpack.c.b16 %v1699, %v1695
    %v1928 = vpack.c.b16 %v1700, %v1696
    %v1929 = vpack.c.b16 %v1701, %v1697
    %v1930 = vpack.c.b16 %v1702, %v1698
    %v1931 = vpack.c.b16 %v1707, %v1703
    %v1932 = vpack.c.b16 %v1708, %v1704
    %v1933 = vpack.c.b16 %v1709, %v1705
    %v1934 = vpack.c.b16 %v1710, %v1706
    %v1935 = vpack.c.b16 %v1715, %v1711
    %v1936 = vpack.c.b16 %v1716, %v1712
    %v1937 = vpack.c.b16 %v1717, %v1713
    %v1938 = vpack.c.b16 %v1718, %v1714
    %v1939 = vpack.c.b16 %v1723, %v1719
    %v1940 = vpack.c.b16 %v1724, %v1720
    %v1941 = vpack.c.b16 %v1725, %v1721
    %v1942 = vpack.c.b16 %v1726, %v1722
    %v1943 = vpack.c.b16 %v1731, %v1727
    %v1944 = vpack.c.b16 %v1732, %v1728
    %v1945 = vpack.c.b16 %v1733, %v1729
    %v1946 = vpack.c.b16 %v1734, %v1730
    %v1947 = vpack.c.b16 %v1739, %v1735
    %v1948 = vpack.c.b16 %v1740, %v1736
    %v1949 = vpack.c.b16 %v1741, %v1737
    %v1950 = vpack.c.b16 %v1742, %v1738
    %v1951 = vpack.c.b16 %v1747, %v1743
    %v1952 = vpack.c.b16 %v1748, %v1744
    %v1953 = vpack.c.b16 %v1749, %v1745
    %v1954 = vpack.c.b16 %v1750, %v1746
    %v1955 = vpack.c.b16 %v1755, %v1751
    %v1956 = vpack.c.b16 %v1756, %v1752
    %v1957 = vpack.c.b16 %v1757, %v1753
    %v1958 = vpack.c.b16 %v1758, %v1754
    %v1959 = vpack.c.b16 %v1763, %v1759
    %v1960 = vpack.c.b16 %v1764, %v1760
    %v1961 = vpack.c.b16 %v1765, %v1761
    %v1962 = vpack.c.b16 %v1766, %v1762
    %v1963 = vpack.c.b16 %v1771, %v1767
    %v1964 = vpack.c.b16 %v1772, %v1768
    %v1965 = vpack.c.b16 %v1773, %v1769
    %v1966 = vpack.c.b16 %v1774, %v1770
    %v1967 = vpack.c.b16 %v1779, %v1775
    %v1968 = vpack.c.b16 %v1780, %v1776
    %v1969 = vpack.c.b16 %v1781, %v1777
    %v1970 = vpack.c.b16 %v1782, %v1778
    %v1971 = vpack.c.b16 %v1787, %v1783
    %v1972 = vpack.c.b16 %v1788, %v1784
    %v1973 = vpack.c.b16 %v1789, %v1785
    %v1974 = vpack.c.b16 %v1790, %v1786
    %v1975 = vpack.c.b16 %v1795, %v1791
    %v1976 = vpack.c.b16 %v1796, %v1792
    %v1977 = vpack.c.b16 %v1797, %v1793
    %v1978 = vpack.c.b16 %v1798, %v1794
    %v1979 = vpack.c.b16 %v1803, %v1799
    %v1980 = vpack.c.b16 %v1804, %v1800
    %v1981 = vpack.c.b16 %v1805, %v1801
    %v1982 = vpack.c.b16 %v1806, %v1802
    %v1983 = vpack.c.b16 %v1811, %v1807
    %v1984 = vpack.c.b16 %v1812, %v1808
    %v1985 = vpack.c.b16 %v1813, %v1809
    %v1986 = vpack.c.b16 %v1814, %v1810
    %v1987 = vpack.c.b16 %v1819, %v1815
    %v1988 = vpack.c.b16 %v1820, %v1816
    %v1989 = vpack.c.b16 %v1821, %v1817
    %v1990 = vpack.c.b16 %v1822, %v1818
    %v1991 = vpack.c.b16 %v1827, %v1823
    %v1992 = vpack.c.b16 %v1828, %v1824
    %v1993 = vpack.c.b16 %v1829, %v1825
    %v1994 = vpack.c.b16 %v1830, %v1826
    %v1995 = vpack.c.b16 %v1835, %v1831
    %v1996 = vpack.c.b16 %v1836, %v1832
    %v1997 = vpack.c.b16 %v1837, %v1833
    %v1998 = vpack.c.b16 %v1838, %v1834
    %v1999 = vpack.c.b16 %v1843, %v1839
    %v2000 = vpack.c.b16 %v1844, %v1840
    %v2001 = vpack.c.b16 %v1845, %v1841
    %v2002 = vpack.c.b16 %v1846, %v1842
    %v2003 = vpack.c.b16 %v1851, %v1847
    %v2004 = vpack.c.b16 %v1852, %v1848
    %v2005 = vpack.c.b16 %v1853, %v1849
    %v2006 = vpack.c.b16 %v1854, %v1850
    %v2007 = vpack.c.b16 %v1859, %v1855
    %v2008 = vpack.c.b16 %v1860, %v1856
    %v2009 = vpack.c.b16 %v1861, %v1857
    %v2010 = vpack.c.b16 %v1862, %v1858
    %v2011 = vpack.c.b16 %v1867, %v1863
    %v2012 = vpack.c.b16 %v1868, %v1864
    %v2013 = vpack.c.b16 %v1869, %v1865
    %v2014 = vpack.c.b16 %v1870, %v1866
    %v2015 = vpack.c.b16 %v1875, %v1871
    %v2016 = vpack.c.b16 %v1876, %v1872
    %v2017 = vpack.c.b16 %v1877, %v1873
    %v2018 = vpack.c.b16 %v1878, %v1874
    %v2019 = vpack.c.b16 %v1883, %v1879
    %v2020 = vpack.c.b16 %v1884, %v1880
    %v2021 = vpack.c.b16 %v1885, %v1881
    %v2022 = vpack.c.b16 %v1886, %v1882
    %v2023 = vpack.c.b16 %v1891, %v1887
    %v2024 = vpack.c.b16 %v1892, %v1888
    %v2025 = vpack.c.b16 %v1893, %v1889
    %v2026 = vpack.c.b16 %v1894, %v1890
    %v2027 = vpack.c.b16 %v1899, %v1895
    %v2028 = vpack.c.b16 %v1900, %v1896
    %v2029 = vpack.c.b16 %v1901, %v1897
    %v2030 = vpack.c.b16 %v1902, %v1898
    %2159 = vmatpush.bf16.msra.mxu0 %v1931
    %2160 = vmatpush.bf16.msra.mxu0 %v1927
    %2161 = vmatpush.bf16.msra.mxu0 %v1923
    %2162 = vmatpush.bf16.msra.mxu0 %v1919
    %2163 = vmatpush.bf16.msra.mxu0 %v1915
    %2164 = vmatpush.bf16.msra.mxu0 %v1911
    %2165 = vmatpush.bf16.msra.mxu0 %v1907
    %2166 = vmatpush.bf16.msra.mxu0 %v1903
    %2167 = vmatmul.bf16.gmra.mxu0 %v1375
    %v2168 = vpop.f32.mrf.mxu0
    %v2169 = vadd.f32 %v1515, %v2168
    %v2170 = vpop.f32.mrf.mxu0
    %2171 = vdwg.mxu0
    %2172 = vmatpush.bf16.msra.mxu0 %v1963
    %2173 = vmatpush.bf16.msra.mxu0 %v1959
    %2174 = vmatpush.bf16.msra.mxu0 %v1955
    %2175 = vmatpush.bf16.msra.mxu0 %v1951
    %2176 = vmatpush.bf16.msra.mxu0 %v1947
    %2177 = vmatpush.bf16.msra.mxu0 %v1943
    %2178 = vmatpush.bf16.msra.mxu0 %v1939
    %2179 = vmatpush.bf16.msra.mxu0 %v1935
    %2180 = vmatmul.bf16.gmra.mxu0 %v1376
    %v2181 = vpop.f32.mrf.mxu0
    %v2182 = vadd.f32 %v2169, %v2181
    %v2183 = vpop.f32.mrf.mxu0
    %2184 = vdwg.mxu0
    %2185 = vmatpush.bf16.msra.mxu0 %v1995
    %2186 = vmatpush.bf16.msra.mxu0 %v1991
    %2187 = vmatpush.bf16.msra.mxu0 %v1987
    %2188 = vmatpush.bf16.msra.mxu0 %v1983
    %2189 = vmatpush.bf16.msra.mxu0 %v1979
    %2190 = vmatpush.bf16.msra.mxu0 %v1975
    %2191 = vmatpush.bf16.msra.mxu0 %v1971
    %2192 = vmatpush.bf16.msra.mxu0 %v1967
    %2193 = vmatmul.bf16.gmra.mxu0 %v1377
    %v2194 = vpop.f32.mrf.mxu0
    %v2195 = vadd.f32 %v2182, %v2194
    %v2196 = vpop.f32.mrf.mxu0
    %2197 = vdwg.mxu0
    %2198 = vmatpush.bf16.msra.mxu0 %v2027
    %2199 = vmatpush.bf16.msra.mxu0 %v2023
    %2200 = vmatpush.bf16.msra.mxu0 %v2019
    %2201 = vmatpush.bf16.msra.mxu0 %v2015
    %2202 = vmatpush.bf16.msra.mxu0 %v2011
    %2203 = vmatpush.bf16.msra.mxu0 %v2007
    %2204 = vmatpush.bf16.msra.mxu0 %v2003
    %2205 = vmatpush.bf16.msra.mxu0 %v1999
    %2206 = vmatmul.bf16.gmra.mxu0 %v1378
    %v2207 = vpop.f32.mrf.mxu0
    %v2208 = vadd.f32 %v2195, %v2207
    %v2209 = vpop.f32.mrf.mxu0
    %2210 = vdwg.mxu0
    %2211 = vmatpush.bf16.msra.mxu0 %v1932
    %2212 = vmatpush.bf16.msra.mxu0 %v1928
    %2213 = vmatpush.bf16.msra.mxu0 %v1924
    %2214 = vmatpush.bf16.msra.mxu0 %v1920
    %2215 = vmatpush.bf16.msra.mxu0 %v1916
    %2216 = vmatpush.bf16.msra.mxu0 %v1912
    %2217 = vmatpush.bf16.msra.mxu0 %v1908
    %2218 = vmatpush.bf16.msra.mxu0 %v1904
    %2219 = vmatmul.bf16.gmra.mxu0 %v1375
    %v2220 = vpop.f32.mrf.mxu0
    %v2221 = vadd.f32 %v1516, %v2220
    %v2222 = vpop.f32.mrf.mxu0
    %2223 = vdwg.mxu0
    %2224 = vmatpush.bf16.msra.mxu0 %v1964
    %2225 = vmatpush.bf16.msra.mxu0 %v1960
    %2226 = vmatpush.bf16.msra.mxu0 %v1956
    %2227 = vmatpush.bf16.msra.mxu0 %v1952
    %2228 = vmatpush.bf16.msra.mxu0 %v1948
    %2229 = vmatpush.bf16.msra.mxu0 %v1944
    %2230 = vmatpush.bf16.msra.mxu0 %v1940
    %2231 = vmatpush.bf16.msra.mxu0 %v1936
    %2232 = vmatmul.bf16.gmra.mxu0 %v1376
    %v2233 = vpop.f32.mrf.mxu0
    %v2234 = vadd.f32 %v2221, %v2233
    %v2235 = vpop.f32.mrf.mxu0
    %2236 = vdwg.mxu0
    %2237 = vmatpush.bf16.msra.mxu0 %v1996
    %2238 = vmatpush.bf16.msra.mxu0 %v1992
    %2239 = vmatpush.bf16.msra.mxu0 %v1988
    %2240 = vmatpush.bf16.msra.mxu0 %v1984
    %2241 = vmatpush.bf16.msra.mxu0 %v1980
    %2242 = vmatpush.bf16.msra.mxu0 %v1976
    %2243 = vmatpush.bf16.msra.mxu0 %v1972
    %2244 = vmatpush.bf16.msra.mxu0 %v1968
    %2245 = vmatmul.bf16.gmra.mxu0 %v1377
    %v2246 = vpop.f32.mrf.mxu0
    %v2247 = vadd.f32 %v2234, %v2246
    %v2248 = vpop.f32.mrf.mxu0
    %2249 = vdwg.mxu0
    %2250 = vmatpush.bf16.msra.mxu0 %v2028
    %2251 = vmatpush.bf16.msra.mxu0 %v2024
    %2252 = vmatpush.bf16.msra.mxu0 %v2020
    %2253 = vmatpush.bf16.msra.mxu0 %v2016
    %2254 = vmatpush.bf16.msra.mxu0 %v2012
    %2255 = vmatpush.bf16.msra.mxu0 %v2008
    %2256 = vmatpush.bf16.msra.mxu0 %v2004
    %2257 = vmatpush.bf16.msra.mxu0 %v2000
    %2258 = vmatmul.bf16.gmra.mxu0 %v1378
    %v2259 = vpop.f32.mrf.mxu0
    %v2260 = vadd.f32 %v2247, %v2259
    %v2261 = vpop.f32.mrf.mxu0
    %2262 = vdwg.mxu0
    %2263 = vmatpush.bf16.msra.mxu0 %v1933
    %2264 = vmatpush.bf16.msra.mxu0 %v1929
    %2265 = vmatpush.bf16.msra.mxu0 %v1925
    %2266 = vmatpush.bf16.msra.mxu0 %v1921
    %2267 = vmatpush.bf16.msra.mxu0 %v1917
    %2268 = vmatpush.bf16.msra.mxu0 %v1913
    %2269 = vmatpush.bf16.msra.mxu0 %v1909
    %2270 = vmatpush.bf16.msra.mxu0 %v1905
    %2271 = vmatmul.bf16.gmra.mxu0 %v1375
    %v2272 = vpop.f32.mrf.mxu0
    %v2273 = vadd.f32 %v1517, %v2272
    %v2274 = vpop.f32.mrf.mxu0
    %2275 = vdwg.mxu0
    %2276 = vmatpush.bf16.msra.mxu0 %v1965
    %2277 = vmatpush.bf16.msra.mxu0 %v1961
    %2278 = vmatpush.bf16.msra.mxu0 %v1957
    %2279 = vmatpush.bf16.msra.mxu0 %v1953
    %2280 = vmatpush.bf16.msra.mxu0 %v1949
    %2281 = vmatpush.bf16.msra.mxu0 %v1945
    %2282 = vmatpush.bf16.msra.mxu0 %v1941
    %2283 = vmatpush.bf16.msra.mxu0 %v1937
    %2284 = vmatmul.bf16.gmra.mxu0 %v1376
    %v2285 = vpop.f32.mrf.mxu0
    %v2286 = vadd.f32 %v2273, %v2285
    %v2287 = vpop.f32.mrf.mxu0
    %2288 = vdwg.mxu0
    %2289 = vmatpush.bf16.msra.mxu0 %v1997
    %2290 = vmatpush.bf16.msra.mxu0 %v1993
    %2291 = vmatpush.bf16.msra.mxu0 %v1989
    %2292 = vmatpush.bf16.msra.mxu0 %v1985
    %2293 = vmatpush.bf16.msra.mxu0 %v1981
    %2294 = vmatpush.bf16.msra.mxu0 %v1977
    %2295 = vmatpush.bf16.msra.mxu0 %v1973
    %2296 = vmatpush.bf16.msra.mxu0 %v1969
    %2297 = vmatmul.bf16.gmra.mxu0 %v1377
    %v2298 = vpop.f32.mrf.mxu0
    %v2299 = vadd.f32 %v2286, %v2298
    %v2300 = vpop.f32.mrf.mxu0
    %2301 = vdwg.mxu0
    %2302 = vmatpush.bf16.msra.mxu0 %v2029
    %2303 = vmatpush.bf16.msra.mxu0 %v2025
    %2304 = vmatpush.bf16.msra.mxu0 %v2021
    %2305 = vmatpush.bf16.msra.mxu0 %v2017
    %2306 = vmatpush.bf16.msra.mxu0 %v2013
    %2307 = vmatpush.bf16.msra.mxu0 %v2009
    %2308 = vmatpush.bf16.msra.mxu0 %v2005
    %2309 = vmatpush.bf16.msra.mxu0 %v2001
    %2310 = vmatmul.bf16.gmra.mxu0 %v1378
    %v2311 = vpop.f32.mrf.mxu0
    %v2312 = vadd.f32 %v2299, %v2311
    %v2313 = vpop.f32.mrf.mxu0
    %2314 = vdwg.mxu0
    %2315 = vmatpush.bf16.msra.mxu0 %v1934
    %2316 = vmatpush.bf16.msra.mxu0 %v1930
    %2317 = vmatpush.bf16.msra.mxu0 %v1926
    %2318 = vmatpush.bf16.msra.mxu0 %v1922
    %2319 = vmatpush.bf16.msra.mxu0 %v1918
    %2320 = vmatpush.bf16.msra.mxu0 %v1914
    %2321 = vmatpush.bf16.msra.mxu0 %v1910
    %2322 = vmatpush.bf16.msra.mxu0 %v1906
    %2323 = vmatmul.bf16.gmra.mxu0 %v1375
    %v2324 = vpop.f32.mrf.mxu0
    %v2325 = vadd.f32 %v1518, %v2324
    %v2326 = vpop.f32.mrf.mxu0
    %2327 = vdwg.mxu0
    %2328 = vmatpush.bf16.msra.mxu0 %v1966
    %2329 = vmatpush.bf16.msra.mxu0 %v1962
    %2330 = vmatpush.bf16.msra.mxu0 %v1958
    %2331 = vmatpush.bf16.msra.mxu0 %v1954
    %2332 = vmatpush.bf16.msra.mxu0 %v1950
    %2333 = vmatpush.bf16.msra.mxu0 %v1946
    %2334 = vmatpush.bf16.msra.mxu0 %v1942
    %2335 = vmatpush.bf16.msra.mxu0 %v1938
    %2336 = vmatmul.bf16.gmra.mxu0 %v1376
    %v2337 = vpop.f32.mrf.mxu0
    %v2338 = vadd.f32 %v2325, %v2337
    %v2339 = vpop.f32.mrf.mxu0
    %2340 = vdwg.mxu0
    %2341 = vmatpush.bf16.msra.mxu0 %v1998
    %2342 = vmatpush.bf16.msra.mxu0 %v1994
    %2343 = vmatpush.bf16.msra.mxu0 %v1990
    %2344 = vmatpush.bf16.msra.mxu0 %v1986
    %2345 = vmatpush.bf16.msra.mxu0 %v1982
    %2346 = vmatpush.bf16.msra.mxu0 %v1978
    %2347 = vmatpush.bf16.msra.mxu0 %v1974
    %2348 = vmatpush.bf16.msra.mxu0 %v1970
    %2349 = vmatmul.bf16.gmra.mxu0 %v1377
    %v2350 = vpop.f32.mrf.mxu0
    %v2351 = vadd.f32 %v2338, %v2350
    %v2352 = vpop.f32.mrf.mxu0
    %2353 = vdwg.mxu0
    %2354 = vmatpush.bf16.msra.mxu0 %v2030
    %2355 = vmatpush.bf16.msra.mxu0 %v2026
    %2356 = vmatpush.bf16.msra.mxu0 %v2022
    %2357 = vmatpush.bf16.msra.mxu0 %v2018
    %2358 = vmatpush.bf16.msra.mxu0 %v2014
    %2359 = vmatpush.bf16.msra.mxu0 %v2010
    %2360 = vmatpush.bf16.msra.mxu0 %v2006
    %2361 = vmatpush.bf16.msra.mxu0 %v2002
    %2362 = vmatmul.bf16.gmra.mxu0 %v1378
    %v2363 = vpop.f32.mrf.mxu0
    %v2364 = vadd.f32 %v2351, %v2363
    %v2365 = vpop.f32.mrf.mxu0
    %2366 = vdwg.mxu0
    %v2367 = vmax.f32 %v2208, 0.0
    %v2368 = vmax.f32 %v2260, 0.0
    %v2369 = vmax.f32 %v2312, 0.0
    %v2370 = vmax.f32 %v2364, 0.0
    %v2371 = vpack.c.bf16 %v2367, %v2367
    %v2372 = vpack.c.bf16 %v2368, %v2368
    %v2373 = vpack.c.bf16 %v2369, %v2369
    %v2374 = vpack.c.bf16 %v2370, %v2370
    %v2375 = vld [vmem:[#allocation10] sm:$0xf]
    %v2376 = vld [vmem:[#allocation10 + $0x4] sm:$0xf]
    %v2377 = vld [vmem:[#allocation10 + $0x8] sm:$0xf]
    %v2378 = vld [vmem:[#allocation10 + $0xc] sm:$0xf]
    %v2379 = vld [vmem:[#allocation10 + $0x10] sm:$0xf]
    %v2380 = vld [vmem:[#allocation10 + $0x14] sm:$0xf]
    %v2381 = vld [vmem:[#allocation10 + $0x18] sm:$0xf]
    %v2382 = vld [vmem:[#allocation10 + $0x1c] sm:$0xf]
    %v2383 = vld [vmem:[#allocation10 + $0x20] sm:$0xf]
    %v2384 = vld [vmem:[#allocation10 + $0x24] sm:$0xf]
    %v2385 = vld [vmem:[#allocation10 + $0x28] sm:$0xf]
    %v2386 = vld [vmem:[#allocation10 + $0x2c] sm:$0xf]
    %v2387 = vld [vmem:[#allocation10 + $0x30] sm:$0xf]
    %v2388 = vld [vmem:[#allocation10 + $0x34] sm:$0xf]
    %v2389 = vld [vmem:[#allocation10 + $0x38] sm:$0xf]
    %v2390 = vld [vmem:[#allocation10 + $0x3c] sm:$0xf]
    %v2391 = vld [vmem:[#allocation10 + $0x40] sm:$0xf]
    %v2392 = vld [vmem:[#allocation10 + $0x44] sm:$0xf]
    %v2393 = vld [vmem:[#allocation10 + $0x48] sm:$0xf]
    %v2394 = vld [vmem:[#allocation10 + $0x4c] sm:$0xf]
    %v2395 = vld [vmem:[#allocation10 + $0x50] sm:$0xf]
    %v2396 = vld [vmem:[#allocation10 + $0x54] sm:$0xf]
    %v2397 = vld [vmem:[#allocation10 + $0x58] sm:$0xf]
    %v2398 = vld [vmem:[#allocation10 + $0x5c] sm:$0xf]
    %v2399 = vld [vmem:[#allocation10 + $0x60] sm:$0xf]
    %v2400 = vld [vmem:[#allocation10 + $0x64] sm:$0xf]
    %v2401 = vld [vmem:[#allocation10 + $0x68] sm:$0xf]
    %v2402 = vld [vmem:[#allocation10 + $0x6c] sm:$0xf]
    %v2403 = vld [vmem:[#allocation10 + $0x70] sm:$0xf]
    %v2404 = vld [vmem:[#allocation10 + $0x74] sm:$0xf]
    %v2405 = vld [vmem:[#allocation10 + $0x78] sm:$0xf]
    %v2406 = vld [vmem:[#allocation10 + $0x7c] sm:$0xf]
    %v2407 = vld [vmem:[#allocation10 + $0x80] sm:$0xf]
    %v2408 = vld [vmem:[#allocation10 + $0x84] sm:$0xf]
    %v2409 = vld [vmem:[#allocation10 + $0x88] sm:$0xf]
    %v2410 = vld [vmem:[#allocation10 + $0x8c] sm:$0xf]
    %v2411 = vld [vmem:[#allocation10 + $0x90] sm:$0xf]
    %v2412 = vld [vmem:[#allocation10 + $0x94] sm:$0xf]
    %v2413 = vld [vmem:[#allocation10 + $0x98] sm:$0xf]
    %v2414 = vld [vmem:[#allocation10 + $0x9c] sm:$0xf]
    %v2415 = vld [vmem:[#allocation10 + $0xa0] sm:$0xf]
    %v2416 = vld [vmem:[#allocation10 + $0xa4] sm:$0xf]
    %v2417 = vld [vmem:[#allocation10 + $0xa8] sm:$0xf]
    %v2418 = vld [vmem:[#allocation10 + $0xac] sm:$0xf]
    %v2419 = vld [vmem:[#allocation10 + $0xb0] sm:$0xf]
    %v2420 = vld [vmem:[#allocation10 + $0xb4] sm:$0xf]
    %v2421 = vld [vmem:[#allocation10 + $0xb8] sm:$0xf]
    %v2422 = vld [vmem:[#allocation10 + $0xbc] sm:$0xf]
    %v2423 = vld [vmem:[#allocation10 + $0xc0] sm:$0xf]
    %v2424 = vld [vmem:[#allocation10 + $0xc4] sm:$0xf]
    %v2425 = vld [vmem:[#allocation10 + $0xc8] sm:$0xf]
    %v2426 = vld [vmem:[#allocation10 + $0xcc] sm:$0xf]
    %v2427 = vld [vmem:[#allocation10 + $0xd0] sm:$0xf]
    %v2428 = vld [vmem:[#allocation10 + $0xd4] sm:$0xf]
    %v2429 = vld [vmem:[#allocation10 + $0xd8] sm:$0xf]
    %v2430 = vld [vmem:[#allocation10 + $0xdc] sm:$0xf]
    %v2431 = vld [vmem:[#allocation10 + $0xe0] sm:$0xf]
    %v2432 = vld [vmem:[#allocation10 + $0xe4] sm:$0xf]
    %v2433 = vld [vmem:[#allocation10 + $0xe8] sm:$0xf]
    %v2434 = vld [vmem:[#allocation10 + $0xec] sm:$0xf]
    %v2435 = vld [vmem:[#allocation10 + $0xf0] sm:$0xf]
    %v2436 = vld [vmem:[#allocation10 + $0xf4] sm:$0xf]
    %v2437 = vld [vmem:[#allocation10 + $0xf8] sm:$0xf]
    %v2438 = vld [vmem:[#allocation10 + $0xfc] sm:$0xf]
    %v2439 = vperm.slane %v115, 3
    %v2504 = vunpack.c.l.b16 %v2375
    %v2505 = vunpack.c.l.b16 %v2376
    %v2506 = vunpack.c.l.b16 %v2377
    %v2507 = vunpack.c.l.b16 %v2378
    %v2508 = vunpack.c.l.b16 %v2379
    %v2509 = vunpack.c.l.b16 %v2380
    %v2510 = vunpack.c.l.b16 %v2381
    %v2511 = vunpack.c.l.b16 %v2382
    %v2512 = vunpack.c.l.b16 %v2383
    %v2513 = vunpack.c.l.b16 %v2384
    %v2514 = vunpack.c.l.b16 %v2385
    %v2515 = vunpack.c.l.b16 %v2386
    %v2516 = vunpack.c.l.b16 %v2387
    %v2517 = vunpack.c.l.b16 %v2388
    %v2518 = vunpack.c.l.b16 %v2389
    %v2519 = vunpack.c.l.b16 %v2390
    %v2520 = vunpack.c.l.b16 %v2391
    %v2521 = vunpack.c.l.b16 %v2392
    %v2522 = vunpack.c.l.b16 %v2393
    %v2523 = vunpack.c.l.b16 %v2394
    %v2524 = vunpack.c.l.b16 %v2395
    %v2525 = vunpack.c.l.b16 %v2396
    %v2526 = vunpack.c.l.b16 %v2397
    %v2527 = vunpack.c.l.b16 %v2398
    %v2528 = vunpack.c.l.b16 %v2399
    %v2529 = vunpack.c.l.b16 %v2400
    %v2530 = vunpack.c.l.b16 %v2401
    %v2531 = vunpack.c.l.b16 %v2402
    %v2532 = vunpack.c.l.b16 %v2403
    %v2533 = vunpack.c.l.b16 %v2404
    %v2534 = vunpack.c.l.b16 %v2405
    %v2535 = vunpack.c.l.b16 %v2406
    %v2536 = vunpack.c.l.b16 %v2407
    %v2537 = vunpack.c.l.b16 %v2408
    %v2538 = vunpack.c.l.b16 %v2409
    %v2539 = vunpack.c.l.b16 %v2410
    %v2540 = vunpack.c.l.b16 %v2411
    %v2541 = vunpack.c.l.b16 %v2412
    %v2542 = vunpack.c.l.b16 %v2413
    %v2543 = vunpack.c.l.b16 %v2414
    %v2544 = vunpack.c.l.b16 %v2415
    %v2545 = vunpack.c.l.b16 %v2416
    %v2546 = vunpack.c.l.b16 %v2417
    %v2547 = vunpack.c.l.b16 %v2418
    %v2548 = vunpack.c.l.b16 %v2419
    %v2549 = vunpack.c.l.b16 %v2420
    %v2550 = vunpack.c.l.b16 %v2421
    %v2551 = vunpack.c.l.b16 %v2422
    %v2552 = vunpack.c.l.b16 %v2423
    %v2553 = vunpack.c.l.b16 %v2424
    %v2554 = vunpack.c.l.b16 %v2425
    %v2555 = vunpack.c.l.b16 %v2426
    %v2556 = vunpack.c.l.b16 %v2427
    %v2557 = vunpack.c.l.b16 %v2428
    %v2558 = vunpack.c.l.b16 %v2429
    %v2559 = vunpack.c.l.b16 %v2430
    %v2560 = vunpack.c.l.b16 %v2431
    %v2561 = vunpack.c.l.b16 %v2432
    %v2562 = vunpack.c.l.b16 %v2433
    %v2563 = vunpack.c.l.b16 %v2434
    %v2564 = vunpack.c.l.b16 %v2435
    %v2565 = vunpack.c.l.b16 %v2436
    %v2566 = vunpack.c.l.b16 %v2437
    %v2567 = vunpack.c.l.b16 %v2438
    %v2568 = vpack.c.b16 %v2505, %v2504
    %v2569 = vpack.c.b16 %v2507, %v2506
    %v2570 = vpack.c.b16 %v2509, %v2508
    %v2571 = vpack.c.b16 %v2511, %v2510
    %v2572 = vpack.c.b16 %v2513, %v2512
    %v2573 = vpack.c.b16 %v2515, %v2514
    %v2574 = vpack.c.b16 %v2517, %v2516
    %v2575 = vpack.c.b16 %v2519, %v2518
    %v2576 = vpack.c.b16 %v2521, %v2520
    %v2577 = vpack.c.b16 %v2523, %v2522
    %v2578 = vpack.c.b16 %v2525, %v2524
    %v2579 = vpack.c.b16 %v2527, %v2526
    %v2580 = vpack.c.b16 %v2529, %v2528
    %v2581 = vpack.c.b16 %v2531, %v2530
    %v2582 = vpack.c.b16 %v2533, %v2532
    %v2583 = vpack.c.b16 %v2535, %v2534
    %v2584 = vpack.c.b16 %v2537, %v2536
    %v2585 = vpack.c.b16 %v2539, %v2538
    %v2586 = vpack.c.b16 %v2541, %v2540
    %v2587 = vpack.c.b16 %v2543, %v2542
    %v2588 = vpack.c.b16 %v2545, %v2544
    %v2589 = vpack.c.b16 %v2547, %v2546
    %v2590 = vpack.c.b16 %v2549, %v2548
    %v2591 = vpack.c.b16 %v2551, %v2550
    %v2592 = vpack.c.b16 %v2553, %v2552
    %v2593 = vpack.c.b16 %v2555, %v2554
    %v2594 = vpack.c.b16 %v2557, %v2556
    %v2595 = vpack.c.b16 %v2559, %v2558
    %v2596 = vpack.c.b16 %v2561, %v2560
    %v2597 = vpack.c.b16 %v2563, %v2562
    %v2598 = vpack.c.b16 %v2565, %v2564
    %v2599 = vpack.c.b16 %v2567, %v2566
    %2632 = vmatpush.bf16.msra.mxu0 %v2575
    %2633 = vmatpush.bf16.msra.mxu0 %v2574
    %2634 = vmatpush.bf16.msra.mxu0 %v2573
    %2635 = vmatpush.bf16.msra.mxu0 %v2572
    %2636 = vmatpush.bf16.msra.mxu0 %v2571
    %2637 = vmatpush.bf16.msra.mxu0 %v2570
    %2638 = vmatpush.bf16.msra.mxu0 %v2569
    %2639 = vmatpush.bf16.msra.mxu0 %v2568
    %2640 = vmatmul.bf16.gmra.mxu0 %v2371
    %v2641 = vpop.f32.mrf.mxu0
    %v2642 = vadd.f32 %v2439, %v2641
    %v2643 = vpop.f32.mrf.mxu0
    %2644 = vdwg.mxu0
    %2645 = vmatpush.bf16.msra.mxu0 %v2583
    %2646 = vmatpush.bf16.msra.mxu0 %v2582
    %2647 = vmatpush.bf16.msra.mxu0 %v2581
    %2648 = vmatpush.bf16.msra.mxu0 %v2580
    %2649 = vmatpush.bf16.msra.mxu0 %v2579
    %2650 = vmatpush.bf16.msra.mxu0 %v2578
    %2651 = vmatpush.bf16.msra.mxu0 %v2577
    %2652 = vmatpush.bf16.msra.mxu0 %v2576
    %2653 = vmatmul.bf16.gmra.mxu0 %v2372
    %v2654 = vpop.f32.mrf.mxu0
    %v2655 = vadd.f32 %v2642, %v2654
    %v2656 = vpop.f32.mrf.mxu0
    %2657 = vdwg.mxu0
    %2658 = vmatpush.bf16.msra.mxu0 %v2591
    %2659 = vmatpush.bf16.msra.mxu0 %v2590
    %2660 = vmatpush.bf16.msra.mxu0 %v2589
    %2661 = vmatpush.bf16.msra.mxu0 %v2588
    %2662 = vmatpush.bf16.msra.mxu0 %v2587
    %2663 = vmatpush.bf16.msra.mxu0 %v2586
    %2664 = vmatpush.bf16.msra.mxu0 %v2585
    %2665 = vmatpush.bf16.msra.mxu0 %v2584
    %2666 = vmatmul.bf16.gmra.mxu0 %v2373
    %v2667 = vpop.f32.mrf.mxu0
    %v2668 = vadd.f32 %v2655, %v2667
    %v2669 = vpop.f32.mrf.mxu0
    %2670 = vdwg.mxu0
    %2671 = vmatpush.bf16.msra.mxu0 %v2599
    %2672 = vmatpush.bf16.msra.mxu0 %v2598
    %2673 = vmatpush.bf16.msra.mxu0 %v2597
    %2674 = vmatpush.bf16.msra.mxu0 %v2596
    %2675 = vmatpush.bf16.msra.mxu0 %v2595
    %2676 = vmatpush.bf16.msra.mxu0 %v2594
    %2677 = vmatpush.bf16.msra.mxu0 %v2593
    %2678 = vmatpush.bf16.msra.mxu0 %v2592
    %2679 = vmatmul.bf16.gmra.mxu0 %v2374
    %v2680 = vpop.f32.mrf.mxu0
    %v2681 = vadd.f32 %v2668, %v2680
    %v2682 = vpop.f32.mrf.mxu0
    %2683 = vdwg.mxu0
    %2684 = vst [vmem:[#allocation13] sm:$0xff] %v2681
    // Predicated region
    $region50: #{_dn_network_forward_impl.1} parent=1 // pred_check
      _
    $region51: #{_dn_network_forward_impl.1} parent=1 // pred_check_branch
      %2686 = sbr.rel (0) target = $region53
    $region52: #{_dn_network_forward_impl.1} parent=1 // pred_region
      %2688 = vsyncadd [#allocation4], 0
      %s2690 = sshll.u32 [#allocation13], 4
      %s2691 = int_to_ptr.vmem [resolvable:$true] %s2690
      %s2692 = sshll.u32 %s6, 4
      %s2693 = int_to_ptr.hbm [resolvable:$true] %s2692
      %2695 = dma.vmem_to_hbm [thread:$0]  %s2691, 128, %s2693, [#allocation4]
    $region53: #{_dn_network_forward_impl.1} parent=1 // pred_fallthru
      _
    // Predicated region
    $region54: #{_dn_network_forward_impl.1} parent=1 // pred_check
      _
    $region55: #{_dn_network_forward_impl.1} parent=1 // pred_check_branch
      %2697 = sbr.rel (0) target = $region57
    $region56: #{_dn_network_forward_impl.1} parent=1 // pred_region
      %2699 = dma.done [#allocation4], 128
    $region57: #{_dn_network_forward_impl.1} parent=1 // pred_fallthru
      _
    %2700 = vsyncpa [#allocation3], 1
    %2701 = vsyncpa [#allocation6], 1
    %2702 = vsyncpa [#allocation9], 1
    %2703 = vsyncpa [#allocation12], 1
    %2704 = vsyncpa [#allocation4], 1

</llo_original>
